<compile_context>
chip_gen: v6e
topology: v6e:2x2x1
jax: 0.10.0
libtpu: 0.0.40
codegen_flags: <defaults>
</compile_context>

<pallas_src>
import functools
import math

import numpy as np
import jax
import jax.numpy as jnp
from jax import lax
from jax.experimental import pallas as pl
from jax.experimental.pallas import tpu as pltpu


def _wnet_kernel(dilations, C, x_ref, w_ref, o_ref):
    N = x_ref.shape[-1]                  # Bt * Lp (lane axis, batch-major)
    w = w_ref[...]                       # (nl, 2C, 3C + 3) packed weights
    total = sum(dilations)
    use_mxu = C >= 32                    # MXU only pays off for large channel counts

    def shift_left(a, d):
        # a'[..., t] = a[..., (t + d) % N].  The wrapped / cross-segment
        # samples only land in the per-segment invalid tail (length shrinks by
        # sum(dilations)), which the wrapper crops away.
        if d == 0:
            return a
        return jnp.concatenate([a[:, d:], a[:, :d]], axis=1)

    h = x_ref[0]                         # (1, N): single input channel
    mix = None                           # running linear_mix accumulator (1, N)
    cum = 0
    for i, d in enumerate(dilations):    # static python loop (compile time)
        cum += d
        rem = total - cum                # remaining dilation sum after this layer
        wi = w[i]                        # (2C, 3C + 3)
        cin = h.shape[0]
        hR = shift_left(h, d)            # tap at t + d (same shape as h)

        # ---- gates: single stacked pass  [s ; t] = Wg @ [h ; hR] + bg -------
        bg = wi[:, 2 * C:2 * C + 1]      # (2C, 1): [bs ; bt]
        if use_mxu and cin > 1:
            hstack = jnp.concatenate([h, hR], axis=0)                    # (2cin, N)
            Wg = jnp.concatenate([wi[:, 0:cin], wi[:, C:C + cin]], axis=1)
            st = jnp.dot(Wg.astype(jnp.bfloat16), hstack.astype(jnp.bfloat16),
                         preferred_element_type=jnp.float32) + bg
        else:
            # VPU broadcast FMAs on a full-sublane (2C, N) tile; each h / hR
            # row is lane-broadcast exactly once and feeds both gates.
            st = wi[:, 0:1] * h[0:1, :] + wi[:, C:C + 1] * hR[0:1, :] + bg
            for c in range(1, cin):
                st = (st + wi[:, c:c + 1] * h[c:c + 1, :]
                      + wi[:, C + c:C + c + 1] * hR[c:c + 1, :])
        gated = jnp.tanh(st[C:2 * C, :]) * jax.nn.sigmoid(st[0:C, :])    # (C, N)

        # ---- residual 1x1 conv + linear_mix row in one stacked pass ---------
        Wrm = wi[0:C + 1, 2 * C + 1:3 * C + 1]      # (C+1, C): [Wres ; wmix_i]
        brm = wi[0:C + 1, 3 * C + 1:3 * C + 2]      # (C+1, 1): [bres ; 0]
        if use_mxu:
            rm = jnp.dot(Wrm.astype(jnp.bfloat16), gated.astype(jnp.bfloat16),
                         preferred_element_type=jnp.float32) + brm
        else:
            rm = Wrm[:, 0:1] * gated[0:1, :] + brm
            for c in range(1, C):
                rm = rm + Wrm[:, c:c + 1] * gated[c:c + 1, :]

        # residual add against the (t + d)-aligned input; at layer 0 hR has a
        # single channel and broadcasts over channels, matching the PyTorch
        # `out + x[:, :, -out.size(2):]`.
        h = rm[0:C, :] + hR
        # linear_mix: pre-shift this layer's contribution by the compile-time
        # remaining shift so the accumulator stays off the serial shift chain.
        contrib = shift_left(rm[C:C + 1, :], rem)
        mix = contrib if mix is None else mix + contrib

    mix = mix + w[0, 0:1, 3 * C + 2:3 * C + 3]      # linear_mix bias
    o_ref[0] = mix.astype(o_ref.dtype)


def wnet_pallas(x, w_slab, dilations, num_channels, *, block_batch=None):
    """x: (B, 1, L) f32 -> (B, 1, L - sum(dilations)) f32.

    block_batch=None packs the whole batch into one grid step (best for the
    single-TC v5e/v6e at these shapes); set block_batch=B//2 on dual-TC v7x to
    split work across both cores once each core still gets >= 512 lanes.
    """
    B, cin, L = x.shape
    assert cin == 1, "WNet first conv has in_channels=1"
    nl, two_c, ncols = w_slab.shape
    C = num_channels
    assert two_c == 2 * C and ncols == 3 * C + 3
    L_final = L - sum(dilations)
    assert L_final > 0

    Bt = B if block_batch is None else max(1, min(block_batch, B))
    nb = -(-B // Bt)                          # grid steps
    Bpad = nb * Bt
    # pad each batch segment to Lp so the packed lane axis Bt*Lp is a multiple
    # of 128 (lane-dense, unmasked stores)
    m = 128 // math.gcd(Bt, 128)
    Lp = -(-L // m) * m
    N = Bt * Lp

    xp = jnp.pad(x[:, 0, :], ((0, Bpad - B), (0, Lp - L)))
    x_packed = xp.reshape(nb, 1, N)           # batch-major, time-minor packing

    # working-set-based scoped-VMEM request (tiny here; keeps headroom on v7x's
    # 64 MiB physical VMEM).  TODO for real audio lengths: tile the time axis
    # with a sum(dilations) halo per block instead of growing N.
    est_vmem = 4 * (4 * N + 2 * nl * two_c * ncols + 24 * two_c * N)
    vmem_limit = int(min(max(est_vmem, 4 << 20), 64 << 20))

    kernel = functools.partial(_wnet_kernel, tuple(dilations), C)
    y = pl.pallas_call(
        kernel,
        out_shape=jax.ShapeDtypeStruct((nb, 1, N), jnp.float32),
        grid=(nb,),
        in_specs=[
            pl.BlockSpec((1, 1, N), lambda g: (g, 0, 0)),
            pl.BlockSpec((nl, two_c, ncols), lambda g: (0, 0, 0)),
        ],
        out_specs=pl.BlockSpec((1, 1, N), lambda g: (g, 0, 0)),
        compiler_params=pltpu.CompilerParams(
            dimension_semantics=("parallel",),
            vmem_limit_bytes=vmem_limit),
    )(x_packed, w_slab)

    # lane-dense kernel output -> (B, 1, L_final): keep the valid prefix of
    # each batch segment and drop batch/time padding.
    return y.reshape(Bpad, Lp)[:B, :L_final].reshape(B, 1, L_final)


# ----------------------- deterministic parameter init -----------------------
def init_params(key, num_channels, dilations, kernel_size=2):
    """PyTorch-style Conv1d init; returns (per-layer params, packed weight slab)."""
    assert kernel_size == 2, "kernel packs the two taps of a kernel_size=2 conv"
    C = num_channels
    nl = len(dilations)

    def uni(k, shape, fan_in):
        bound = 1.0 / np.sqrt(fan_in)
        return jax.random.uniform(k, shape, jnp.float32, -bound, bound)

    keys = jax.random.split(key, 6 * nl + 2)
    ki = iter(keys)
    ws, bs, wt, bt, wr, br = [], [], [], [], [], []
    for i in range(nl):
        cin = 1 if i == 0 else C            # convolution_stack: first layer in_ch=1
        fan = cin * kernel_size
        ws.append(uni(next(ki), (C, cin, kernel_size), fan))
        bs.append(uni(next(ki), (C,), fan))
        wt.append(uni(next(ki), (C, cin, kernel_size), fan))
        bt.append(uni(next(ki), (C,), fan))
        wr.append(uni(next(ki), (C, C, 1), C))
        br.append(uni(next(ki), (C,), C))
    wmix = uni(next(ki), (1, C * nl, 1), C * nl)
    bmix = uni(next(ki), (1,), C * nl)
    pt = dict(ws=ws, bs=bs, wt=wt, bt=bt, wr=wr, br=br, wmix=wmix, bmix=bmix)

    # single packed weight slab: (nl, 2C, 3C + 3)
    #   gate rows: [0:C] = sigmoid conv, [C:2C] = tanh conv
    #   cols [0:C]   = left-tap weights     cols [C:2C] = right-tap weights
    #   col  [2C]    = gate biases [bs ; bt]
    #   cols [2C+1 : 3C+1], rows [0:C]   = Wres ;  row C = wmix_i
    #   col  [3C+1], rows [0:C]          = bres
    #   slab[0, 0, 3C+2]                 = bmix
    slab = np.zeros((nl, 2 * C, 3 * C + 3), np.float32)
    for i in range(nl):
        cin = 1 if i == 0 else C
        slab[i, 0:C, 0:cin] = np.asarray(ws[i][:, :, 0])
        slab[i, 0:C, C:C + cin] = np.asarray(ws[i][:, :, 1])
        slab[i, C:2 * C, 0:cin] = np.asarray(wt[i][:, :, 0])
        slab[i, C:2 * C, C:C + cin] = np.asarray(wt[i][:, :, 1])
        slab[i, 0:C, 2 * C] = np.asarray(bs[i])
        slab[i, C:2 * C, 2 * C] = np.asarray(bt[i])
        slab[i, 0:C, 2 * C + 1:3 * C + 1] = np.asarray(wr[i][:, :, 0])
        slab[i, C, 2 * C + 1:3 * C + 1] = np.asarray(wmix[0, i * C:(i + 1) * C, 0])
        slab[i, 0:C, 3 * C + 1] = np.asarray(br[i])
    slab[0, 0, 3 * C + 2] = float(bmix[0])
    return pt, jnp.asarray(slab)


# --------------------------- plain-JAX reference ----------------------------
def _conv1d(x, w, b, d):
    y = lax.conv_general_dilated(
        x, w, window_strides=(1,), padding="VALID", rhs_dilation=(d,),
        dimension_numbers=("NCH", "OIH", "NCH"),
        precision=lax.Precision.HIGHEST)
    return y + b[None, :, None]


def ref_forward(x, pt, dilations):
    out = x
    skips = []
    for i, d in enumerate(dilations):
        xi = out
        s = _conv1d(xi, pt["ws"][i], pt["bs"][i], d)
        t = _conv1d(xi, pt["wt"][i], pt["bt"][i], d)
        out = jnp.tanh(t) * jax.nn.sigmoid(s)
        skips.append(out)
        out = _conv1d(out, pt["wr"][i], pt["br"][i], 1)
        out = out + xi[:, :, -out.shape[2]:]
    lf = out.shape[2]
    cat = jnp.concatenate([sk[:, :, -lf:] for sk in skips], axis=1)
    return _conv1d(cat, pt["wmix"], pt["bmix"], 1)


if __name__ == "__main__":
    num_channels, dilation_depth, num_repeat, kernel_size = 4, 3, 2, 2
    B, L = 4, 64
    dilations = [2 ** d for d in range(dilation_depth)] * num_repeat  # [1,2,4,1,2,4]

    key = jax.random.PRNGKey(0)
    kp, kx = jax.random.split(key)
    pt_params, w_slab = init_params(kp, num_channels, dilations, kernel_size)
    x = jax.random.normal(kx, (B, 1, L), jnp.float32)

    y = wnet_pallas(x, w_slab, dilations, num_channels)
    jax.block_until_ready(y)

    y_ref = ref_forward(x, pt_params, dilations)
    np.testing.assert_allclose(np.asarray(y), np.asarray(y_ref),
                               rtol=1e-3, atol=1e-3)
    print("KERNEL_OK")
</pallas_src>

<mosaic_0001>
module attributes {stable_mosaic.version = 11 : i64} {
  func.func @_wnet_kernel(%arg0: i32, %arg1: memref<1x1x256xf32, #tpu.memory_space<vmem>>, %arg2: memref<6x8x15xf32, #tpu.memory_space<vmem>>, %arg3: memref<1x1x256xf32, #tpu.memory_space<vmem>>) attributes {dimension_semantics = [#tpu.dimension_semantics<parallel>], iteration_bounds = array<i64: 1>, scalar_prefetch = 0 : i64, scratch_operands = 0 : i64, tpu.core_type = #tpu.core_type<tc>, window_params = [{transform_indices = @transform_0, window_bounds = array<i64: 1, 1, 256>}, {pipeline_mode = #tpu.pipeline_mode<synchronous>, transform_indices = @transform_1, window_bounds = array<i64: 6, 8, 15>}, {transform_indices = @transform_2, window_bounds = array<i64: 1, 1, 256>}]} {
    %c0 = arith.constant 0 : index
    %c0_0 = arith.constant 0 : index
    %c0_1 = arith.constant 0 : index
    %0 = vector.load %arg2[%c0, %c0_0, %c0_1] : memref<6x8x15xf32, #tpu.memory_space<vmem>>, vector<6x8x15xf32>
    %c0_2 = arith.constant 0 : index
    %c0_3 = arith.constant 0 : index
    %c0_4 = arith.constant 0 : index
    %1 = vector.load %arg1[%c0_2, %c0_3, %c0_4] : memref<1x1x256xf32, #tpu.memory_space<vmem>>, vector<1x1x256xf32>
    %2 = vector.shape_cast %1 : vector<1x1x256xf32> to vector<1x256xf32>
    %3 = vector.extract_strided_slice %0 {offsets = [0, 0, 0], sizes = [1, 8, 15], strides = [1, 1, 1]} : vector<6x8x15xf32> to vector<1x8x15xf32>
    %4 = vector.shape_cast %3 : vector<1x8x15xf32> to vector<8x15xf32>
    %5 = vector.extract_strided_slice %2 {offsets = [0, 1], sizes = [1, 255], strides = [1, 1]} : vector<1x256xf32> to vector<1x255xf32>
    %6 = vector.extract_strided_slice %2 {offsets = [0, 0], sizes = [1, 1], strides = [1, 1]} : vector<1x256xf32> to vector<1x1xf32>
    %7 = tpu.concatenate %5, %6 in 1 : vector<1x255xf32>, vector<1x1xf32> -> vector<1x256xf32>
    %8 = vector.extract_strided_slice %4 {offsets = [0, 8], sizes = [8, 1], strides = [1, 1]} : vector<8x15xf32> to vector<8x1xf32>
    %9 = vector.extract_strided_slice %4 {offsets = [0, 0], sizes = [8, 1], strides = [1, 1]} : vector<8x15xf32> to vector<8x1xf32>
    %10 = vector.broadcast %9 : vector<8x1xf32> to vector<8x256xf32>
    %11 = vector.broadcast %2 : vector<1x256xf32> to vector<8x256xf32>
    %12 = arith.mulf %10, %11 : vector<8x256xf32>
    %13 = vector.extract_strided_slice %4 {offsets = [0, 4], sizes = [8, 1], strides = [1, 1]} : vector<8x15xf32> to vector<8x1xf32>
    %14 = vector.broadcast %13 : vector<8x1xf32> to vector<8x256xf32>
    %15 = vector.broadcast %7 : vector<1x256xf32> to vector<8x256xf32>
    %16 = arith.mulf %14, %15 : vector<8x256xf32>
    %17 = arith.addf %12, %16 : vector<8x256xf32>
    %18 = vector.broadcast %8 : vector<8x1xf32> to vector<8x256xf32>
    %19 = arith.addf %17, %18 : vector<8x256xf32>
    %20 = vector.extract_strided_slice %19 {offsets = [4, 0], sizes = [4, 256], strides = [1, 1]} : vector<8x256xf32> to vector<4x256xf32>
    %21 = math.tanh %20 : vector<4x256xf32>
    %22 = vector.extract_strided_slice %19 {offsets = [0, 0], sizes = [4, 256], strides = [1, 1]} : vector<8x256xf32> to vector<4x256xf32>
    %23 = arith.negf %22 : vector<4x256xf32>
    %24 = math.exp %23 : vector<4x256xf32>
    %cst = arith.constant 1.000000e+00 : f32
    %25 = vector.broadcast %cst : f32 to vector<4x256xf32>
    %26 = arith.addf %25, %24 : vector<4x256xf32>
    %27 = arith.divf %25, %26 : vector<4x256xf32>
    %28 = arith.mulf %21, %27 : vector<4x256xf32>
    %29 = vector.extract_strided_slice %4 {offsets = [0, 9], sizes = [5, 4], strides = [1, 1]} : vector<8x15xf32> to vector<5x4xf32>
    %30 = vector.extract_strided_slice %4 {offsets = [0, 13], sizes = [5, 1], strides = [1, 1]} : vector<8x15xf32> to vector<5x1xf32>
    %31 = vector.extract_strided_slice %29 {offsets = [0, 0], sizes = [5, 1], strides = [1, 1]} : vector<5x4xf32> to vector<5x1xf32>
    %32 = vector.extract_strided_slice %28 {offsets = [0, 0], sizes = [1, 256], strides = [1, 1]} : vector<4x256xf32> to vector<1x256xf32>
    %33 = vector.broadcast %31 : vector<5x1xf32> to vector<5x256xf32>
    %34 = vector.broadcast %32 : vector<1x256xf32> to vector<5x256xf32>
    %35 = arith.mulf %33, %34 : vector<5x256xf32>
    %36 = vector.broadcast %30 : vector<5x1xf32> to vector<5x256xf32>
    %37 = arith.addf %35, %36 : vector<5x256xf32>
    %38 = vector.extract_strided_slice %29 {offsets = [0, 1], sizes = [5, 1], strides = [1, 1]} : vector<5x4xf32> to vector<5x1xf32>
    %39 = vector.extract_strided_slice %28 {offsets = [1, 0], sizes = [1, 256], strides = [1, 1]} : vector<4x256xf32> to vector<1x256xf32>
    %40 = vector.broadcast %38 : vector<5x1xf32> to vector<5x256xf32>
    %41 = vector.broadcast %39 : vector<1x256xf32> to vector<5x256xf32>
    %42 = arith.mulf %40, %41 : vector<5x256xf32>
    %43 = arith.addf %37, %42 : vector<5x256xf32>
    %44 = vector.extract_strided_slice %29 {offsets = [0, 2], sizes = [5, 1], strides = [1, 1]} : vector<5x4xf32> to vector<5x1xf32>
    %45 = vector.extract_strided_slice %28 {offsets = [2, 0], sizes = [1, 256], strides = [1, 1]} : vector<4x256xf32> to vector<1x256xf32>
    %46 = vector.broadcast %44 : vector<5x1xf32> to vector<5x256xf32>
    %47 = vector.broadcast %45 : vector<1x256xf32> to vector<5x256xf32>
    %48 = arith.mulf %46, %47 : vector<5x256xf32>
    %49 = arith.addf %43, %48 : vector<5x256xf32>
    %50 = vector.extract_strided_slice %29 {offsets = [0, 3], sizes = [5, 1], strides = [1, 1]} : vector<5x4xf32> to vector<5x1xf32>
    %51 = vector.extract_strided_slice %28 {offsets = [3, 0], sizes = [1, 256], strides = [1, 1]} : vector<4x256xf32> to vector<1x256xf32>
    %52 = vector.broadcast %50 : vector<5x1xf32> to vector<5x256xf32>
    %53 = vector.broadcast %51 : vector<1x256xf32> to vector<5x256xf32>
    %54 = arith.mulf %52, %53 : vector<5x256xf32>
    %55 = arith.addf %49, %54 : vector<5x256xf32>
    %56 = vector.extract_strided_slice %55 {offsets = [0, 0], sizes = [4, 256], strides = [1, 1]} : vector<5x256xf32> to vector<4x256xf32>
    %57 = vector.broadcast %7 : vector<1x256xf32> to vector<4x256xf32>
    %58 = arith.addf %56, %57 : vector<4x256xf32>
    %59 = vector.extract_strided_slice %55 {offsets = [4, 0], sizes = [1, 256], strides = [1, 1]} : vector<5x256xf32> to vector<1x256xf32>
    %60 = vector.extract_strided_slice %59 {offsets = [0, 13], sizes = [1, 243], strides = [1, 1]} : vector<1x256xf32> to vector<1x243xf32>
    %61 = vector.extract_strided_slice %59 {offsets = [0, 0], sizes = [1, 13], strides = [1, 1]} : vector<1x256xf32> to vector<1x13xf32>
    %62 = tpu.concatenate %60, %61 in 1 : vector<1x243xf32>, vector<1x13xf32> -> vector<1x256xf32>
    %63 = vector.extract_strided_slice %0 {offsets = [1, 0, 0], sizes = [1, 8, 15], strides = [1, 1, 1]} : vector<6x8x15xf32> to vector<1x8x15xf32>
    %64 = vector.shape_cast %63 : vector<1x8x15xf32> to vector<8x15xf32>
    %65 = vector.extract_strided_slice %58 {offsets = [0, 2], sizes = [4, 254], strides = [1, 1]} : vector<4x256xf32> to vector<4x254xf32>
    %66 = vector.extract_strided_slice %58 {offsets = [0, 0], sizes = [4, 2], strides = [1, 1]} : vector<4x256xf32> to vector<4x2xf32>
    %67 = tpu.concatenate %65, %66 in 1 : vector<4x254xf32>, vector<4x2xf32> -> vector<4x256xf32>
    %68 = vector.extract_strided_slice %64 {offsets = [0, 8], sizes = [8, 1], strides = [1, 1]} : vector<8x15xf32> to vector<8x1xf32>
    %69 = vector.extract_strided_slice %64 {offsets = [0, 0], sizes = [8, 1], strides = [1, 1]} : vector<8x15xf32> to vector<8x1xf32>
    %70 = vector.extract_strided_slice %58 {offsets = [0, 0], sizes = [1, 256], strides = [1, 1]} : vector<4x256xf32> to vector<1x256xf32>
    %71 = vector.broadcast %69 : vector<8x1xf32> to vector<8x256xf32>
    %72 = vector.broadcast %70 : vector<1x256xf32> to vector<8x256xf32>
    %73 = arith.mulf %71, %72 : vector<8x256xf32>
    %74 = vector.extract_strided_slice %64 {offsets = [0, 4], sizes = [8, 1], strides = [1, 1]} : vector<8x15xf32> to vector<8x1xf32>
    %75 = vector.extract_strided_slice %67 {offsets = [0, 0], sizes = [1, 256], strides = [1, 1]} : vector<4x256xf32> to vector<1x256xf32>
    %76 = vector.broadcast %74 : vector<8x1xf32> to vector<8x256xf32>
    %77 = vector.broadcast %75 : vector<1x256xf32> to vector<8x256xf32>
    %78 = arith.mulf %76, %77 : vector<8x256xf32>
    %79 = arith.addf %73, %78 : vector<8x256xf32>
    %80 = vector.broadcast %68 : vector<8x1xf32> to vector<8x256xf32>
    %81 = arith.addf %79, %80 : vector<8x256xf32>
    %82 = vector.extract_strided_slice %64 {offsets = [0, 1], sizes = [8, 1], strides = [1, 1]} : vector<8x15xf32> to vector<8x1xf32>
    %83 = vector.extract_strided_slice %58 {offsets = [1, 0], sizes = [1, 256], strides = [1, 1]} : vector<4x256xf32> to vector<1x256xf32>
    %84 = vector.broadcast %82 : vector<8x1xf32> to vector<8x256xf32>
    %85 = vector.broadcast %83 : vector<1x256xf32> to vector<8x256xf32>
    %86 = arith.mulf %84, %85 : vector<8x256xf32>
    %87 = arith.addf %81, %86 : vector<8x256xf32>
    %88 = vector.extract_strided_slice %64 {offsets = [0, 5], sizes = [8, 1], strides = [1, 1]} : vector<8x15xf32> to vector<8x1xf32>
    %89 = vector.extract_strided_slice %67 {offsets = [1, 0], sizes = [1, 256], strides = [1, 1]} : vector<4x256xf32> to vector<1x256xf32>
    %90 = vector.broadcast %88 : vector<8x1xf32> to vector<8x256xf32>
    %91 = vector.broadcast %89 : vector<1x256xf32> to vector<8x256xf32>
    %92 = arith.mulf %90, %91 : vector<8x256xf32>
    %93 = arith.addf %87, %92 : vector<8x256xf32>
    %94 = vector.extract_strided_slice %64 {offsets = [0, 2], sizes = [8, 1], strides = [1, 1]} : vector<8x15xf32> to vector<8x1xf32>
    %95 = vector.extract_strided_slice %58 {offsets = [2, 0], sizes = [1, 256], strides = [1, 1]} : vector<4x256xf32> to vector<1x256xf32>
    %96 = vector.broadcast %94 : vector<8x1xf32> to vector<8x256xf32>
    %97 = vector.broadcast %95 : vector<1x256xf32> to vector<8x256xf32>
    %98 = arith.mulf %96, %97 : vector<8x256xf32>
    %99 = arith.addf %93, %98 : vector<8x256xf32>
    %100 = vector.extract_strided_slice %64 {offsets = [0, 6], sizes = [8, 1], strides = [1, 1]} : vector<8x15xf32> to vector<8x1xf32>
    %101 = vector.extract_strided_slice %67 {offsets = [2, 0], sizes = [1, 256], strides = [1, 1]} : vector<4x256xf32> to vector<1x256xf32>
    %102 = vector.broadcast %100 : vector<8x1xf32> to vector<8x256xf32>
    %103 = vector.broadcast %101 : vector<1x256xf32> to vector<8x256xf32>
    %104 = arith.mulf %102, %103 : vector<8x256xf32>
    %105 = arith.addf %99, %104 : vector<8x256xf32>
    %106 = vector.extract_strided_slice %64 {offsets = [0, 3], sizes = [8, 1], strides = [1, 1]} : vector<8x15xf32> to vector<8x1xf32>
    %107 = vector.extract_strided_slice %58 {offsets = [3, 0], sizes = [1, 256], strides = [1, 1]} : vector<4x256xf32> to vector<1x256xf32>
    %108 = vector.broadcast %106 : vector<8x1xf32> to vector<8x256xf32>
    %109 = vector.broadcast %107 : vector<1x256xf32> to vector<8x256xf32>
    %110 = arith.mulf %108, %109 : vector<8x256xf32>
    %111 = arith.addf %105, %110 : vector<8x256xf32>
    %112 = vector.extract_strided_slice %64 {offsets = [0, 7], sizes = [8, 1], strides = [1, 1]} : vector<8x15xf32> to vector<8x1xf32>
    %113 = vector.extract_strided_slice %67 {offsets = [3, 0], sizes = [1, 256], strides = [1, 1]} : vector<4x256xf32> to vector<1x256xf32>
    %114 = vector.broadcast %112 : vector<8x1xf32> to vector<8x256xf32>
    %115 = vector.broadcast %113 : vector<1x256xf32> to vector<8x256xf32>
    %116 = arith.mulf %114, %115 : vector<8x256xf32>
    %117 = arith.addf %111, %116 : vector<8x256xf32>
    %118 = vector.extract_strided_slice %117 {offsets = [4, 0], sizes = [4, 256], strides = [1, 1]} : vector<8x256xf32> to vector<4x256xf32>
    %119 = math.tanh %118 : vector<4x256xf32>
    %120 = vector.extract_strided_slice %117 {offsets = [0, 0], sizes = [4, 256], strides = [1, 1]} : vector<8x256xf32> to vector<4x256xf32>
    %121 = arith.negf %120 : vector<4x256xf32>
    %122 = math.exp %121 : vector<4x256xf32>
    %cst_5 = arith.constant 1.000000e+00 : f32
    %123 = vector.broadcast %cst_5 : f32 to vector<4x256xf32>
    %124 = arith.addf %123, %122 : vector<4x256xf32>
    %125 = arith.divf %123, %124 : vector<4x256xf32>
    %126 = arith.mulf %119, %125 : vector<4x256xf32>
    %127 = vector.extract_strided_slice %64 {offsets = [0, 9], sizes = [5, 4], strides = [1, 1]} : vector<8x15xf32> to vector<5x4xf32>
    %128 = vector.extract_strided_slice %64 {offsets = [0, 13], sizes = [5, 1], strides = [1, 1]} : vector<8x15xf32> to vector<5x1xf32>
    %129 = vector.extract_strided_slice %127 {offsets = [0, 0], sizes = [5, 1], strides = [1, 1]} : vector<5x4xf32> to vector<5x1xf32>
    %130 = vector.extract_strided_slice %126 {offsets = [0, 0], sizes = [1, 256], strides = [1, 1]} : vector<4x256xf32> to vector<1x256xf32>
    %131 = vector.broadcast %129 : vector<5x1xf32> to vector<5x256xf32>
    %132 = vector.broadcast %130 : vector<1x256xf32> to vector<5x256xf32>
    %133 = arith.mulf %131, %132 : vector<5x256xf32>
    %134 = vector.broadcast %128 : vector<5x1xf32> to vector<5x256xf32>
    %135 = arith.addf %133, %134 : vector<5x256xf32>
    %136 = vector.extract_strided_slice %127 {offsets = [0, 1], sizes = [5, 1], strides = [1, 1]} : vector<5x4xf32> to vector<5x1xf32>
    %137 = vector.extract_strided_slice %126 {offsets = [1, 0], sizes = [1, 256], strides = [1, 1]} : vector<4x256xf32> to vector<1x256xf32>
    %138 = vector.broadcast %136 : vector<5x1xf32> to vector<5x256xf32>
    %139 = vector.broadcast %137 : vector<1x256xf32> to vector<5x256xf32>
    %140 = arith.mulf %138, %139 : vector<5x256xf32>
    %141 = arith.addf %135, %140 : vector<5x256xf32>
    %142 = vector.extract_strided_slice %127 {offsets = [0, 2], sizes = [5, 1], strides = [1, 1]} : vector<5x4xf32> to vector<5x1xf32>
    %143 = vector.extract_strided_slice %126 {offsets = [2, 0], sizes = [1, 256], strides = [1, 1]} : vector<4x256xf32> to vector<1x256xf32>
    %144 = vector.broadcast %142 : vector<5x1xf32> to vector<5x256xf32>
    %145 = vector.broadcast %143 : vector<1x256xf32> to vector<5x256xf32>
    %146 = arith.mulf %144, %145 : vector<5x256xf32>
    %147 = arith.addf %141, %146 : vector<5x256xf32>
    %148 = vector.extract_strided_slice %127 {offsets = [0, 3], sizes = [5, 1], strides = [1, 1]} : vector<5x4xf32> to vector<5x1xf32>
    %149 = vector.extract_strided_slice %126 {offsets = [3, 0], sizes = [1, 256], strides = [1, 1]} : vector<4x256xf32> to vector<1x256xf32>
    %150 = vector.broadcast %148 : vector<5x1xf32> to vector<5x256xf32>
    %151 = vector.broadcast %149 : vector<1x256xf32> to vector<5x256xf32>
    %152 = arith.mulf %150, %151 : vector<5x256xf32>
    %153 = arith.addf %147, %152 : vector<5x256xf32>
    %154 = vector.extract_strided_slice %153 {offsets = [0, 0], sizes = [4, 256], strides = [1, 1]} : vector<5x256xf32> to vector<4x256xf32>
    %155 = arith.addf %154, %67 : vector<4x256xf32>
    %156 = vector.extract_strided_slice %153 {offsets = [4, 0], sizes = [1, 256], strides = [1, 1]} : vector<5x256xf32> to vector<1x256xf32>
    %157 = vector.extract_strided_slice %156 {offsets = [0, 11], sizes = [1, 245], strides = [1, 1]} : vector<1x256xf32> to vector<1x245xf32>
    %158 = vector.extract_strided_slice %156 {offsets = [0, 0], sizes = [1, 11], strides = [1, 1]} : vector<1x256xf32> to vector<1x11xf32>
    %159 = tpu.concatenate %157, %158 in 1 : vector<1x245xf32>, vector<1x11xf32> -> vector<1x256xf32>
    %160 = arith.addf %62, %159 : vector<1x256xf32>
    %161 = vector.extract_strided_slice %0 {offsets = [2, 0, 0], sizes = [1, 8, 15], strides = [1, 1, 1]} : vector<6x8x15xf32> to vector<1x8x15xf32>
    %162 = vector.shape_cast %161 : vector<1x8x15xf32> to vector<8x15xf32>
    %163 = vector.extract_strided_slice %155 {offsets = [0, 4], sizes = [4, 252], strides = [1, 1]} : vector<4x256xf32> to vector<4x252xf32>
    %164 = vector.extract_strided_slice %155 {offsets = [0, 0], sizes = [4, 4], strides = [1, 1]} : vector<4x256xf32> to vector<4x4xf32>
    %165 = tpu.concatenate %163, %164 in 1 : vector<4x252xf32>, vector<4x4xf32> -> vector<4x256xf32>
    %166 = vector.extract_strided_slice %162 {offsets = [0, 8], sizes = [8, 1], strides = [1, 1]} : vector<8x15xf32> to vector<8x1xf32>
    %167 = vector.extract_strided_slice %162 {offsets = [0, 0], sizes = [8, 1], strides = [1, 1]} : vector<8x15xf32> to vector<8x1xf32>
    %168 = vector.extract_strided_slice %155 {offsets = [0, 0], sizes = [1, 256], strides = [1, 1]} : vector<4x256xf32> to vector<1x256xf32>
    %169 = vector.broadcast %167 : vector<8x1xf32> to vector<8x256xf32>
    %170 = vector.broadcast %168 : vector<1x256xf32> to vector<8x256xf32>
    %171 = arith.mulf %169, %170 : vector<8x256xf32>
    %172 = vector.extract_strided_slice %162 {offsets = [0, 4], sizes = [8, 1], strides = [1, 1]} : vector<8x15xf32> to vector<8x1xf32>
    %173 = vector.extract_strided_slice %165 {offsets = [0, 0], sizes = [1, 256], strides = [1, 1]} : vector<4x256xf32> to vector<1x256xf32>
    %174 = vector.broadcast %172 : vector<8x1xf32> to vector<8x256xf32>
    %175 = vector.broadcast %173 : vector<1x256xf32> to vector<8x256xf32>
    %176 = arith.mulf %174, %175 : vector<8x256xf32>
    %177 = arith.addf %171, %176 : vector<8x256xf32>
    %178 = vector.broadcast %166 : vector<8x1xf32> to vector<8x256xf32>
    %179 = arith.addf %177, %178 : vector<8x256xf32>
    %180 = vector.extract_strided_slice %162 {offsets = [0, 1], sizes = [8, 1], strides = [1, 1]} : vector<8x15xf32> to vector<8x1xf32>
    %181 = vector.extract_strided_slice %155 {offsets = [1, 0], sizes = [1, 256], strides = [1, 1]} : vector<4x256xf32> to vector<1x256xf32>
    %182 = vector.broadcast %180 : vector<8x1xf32> to vector<8x256xf32>
    %183 = vector.broadcast %181 : vector<1x256xf32> to vector<8x256xf32>
    %184 = arith.mulf %182, %183 : vector<8x256xf32>
    %185 = arith.addf %179, %184 : vector<8x256xf32>
    %186 = vector.extract_strided_slice %162 {offsets = [0, 5], sizes = [8, 1], strides = [1, 1]} : vector<8x15xf32> to vector<8x1xf32>
    %187 = vector.extract_strided_slice %165 {offsets = [1, 0], sizes = [1, 256], strides = [1, 1]} : vector<4x256xf32> to vector<1x256xf32>
    %188 = vector.broadcast %186 : vector<8x1xf32> to vector<8x256xf32>
    %189 = vector.broadcast %187 : vector<1x256xf32> to vector<8x256xf32>
    %190 = arith.mulf %188, %189 : vector<8x256xf32>
    %191 = arith.addf %185, %190 : vector<8x256xf32>
    %192 = vector.extract_strided_slice %162 {offsets = [0, 2], sizes = [8, 1], strides = [1, 1]} : vector<8x15xf32> to vector<8x1xf32>
    %193 = vector.extract_strided_slice %155 {offsets = [2, 0], sizes = [1, 256], strides = [1, 1]} : vector<4x256xf32> to vector<1x256xf32>
    %194 = vector.broadcast %192 : vector<8x1xf32> to vector<8x256xf32>
    %195 = vector.broadcast %193 : vector<1x256xf32> to vector<8x256xf32>
    %196 = arith.mulf %194, %195 : vector<8x256xf32>
    %197 = arith.addf %191, %196 : vector<8x256xf32>
    %198 = vector.extract_strided_slice %162 {offsets = [0, 6], sizes = [8, 1], strides = [1, 1]} : vector<8x15xf32> to vector<8x1xf32>
    %199 = vector.extract_strided_slice %165 {offsets = [2, 0], sizes = [1, 256], strides = [1, 1]} : vector<4x256xf32> to vector<1x256xf32>
    %200 = vector.broadcast %198 : vector<8x1xf32> to vector<8x256xf32>
    %201 = vector.broadcast %199 : vector<1x256xf32> to vector<8x256xf32>
    %202 = arith.mulf %200, %201 : vector<8x256xf32>
    %203 = arith.addf %197, %202 : vector<8x256xf32>
    %204 = vector.extract_strided_slice %162 {offsets = [0, 3], sizes = [8, 1], strides = [1, 1]} : vector<8x15xf32> to vector<8x1xf32>
    %205 = vector.extract_strided_slice %155 {offsets = [3, 0], sizes = [1, 256], strides = [1, 1]} : vector<4x256xf32> to vector<1x256xf32>
    %206 = vector.broadcast %204 : vector<8x1xf32> to vector<8x256xf32>
    %207 = vector.broadcast %205 : vector<1x256xf32> to vector<8x256xf32>
    %208 = arith.mulf %206, %207 : vector<8x256xf32>
    %209 = arith.addf %203, %208 : vector<8x256xf32>
    %210 = vector.extract_strided_slice %162 {offsets = [0, 7], sizes = [8, 1], strides = [1, 1]} : vector<8x15xf32> to vector<8x1xf32>
    %211 = vector.extract_strided_slice %165 {offsets = [3, 0], sizes = [1, 256], strides = [1, 1]} : vector<4x256xf32> to vector<1x256xf32>
    %212 = vector.broadcast %210 : vector<8x1xf32> to vector<8x256xf32>
    %213 = vector.broadcast %211 : vector<1x256xf32> to vector<8x256xf32>
    %214 = arith.mulf %212, %213 : vector<8x256xf32>
    %215 = arith.addf %209, %214 : vector<8x256xf32>
    %216 = vector.extract_strided_slice %215 {offsets = [4, 0], sizes = [4, 256], strides = [1, 1]} : vector<8x256xf32> to vector<4x256xf32>
    %217 = math.tanh %216 : vector<4x256xf32>
    %218 = vector.extract_strided_slice %215 {offsets = [0, 0], sizes = [4, 256], strides = [1, 1]} : vector<8x256xf32> to vector<4x256xf32>
    %219 = arith.negf %218 : vector<4x256xf32>
    %220 = math.exp %219 : vector<4x256xf32>
    %cst_6 = arith.constant 1.000000e+00 : f32
    %221 = vector.broadcast %cst_6 : f32 to vector<4x256xf32>
    %222 = arith.addf %221, %220 : vector<4x256xf32>
    %223 = arith.divf %221, %222 : vector<4x256xf32>
    %224 = arith.mulf %217, %223 : vector<4x256xf32>
    %225 = vector.extract_strided_slice %162 {offsets = [0, 9], sizes = [5, 4], strides = [1, 1]} : vector<8x15xf32> to vector<5x4xf32>
    %226 = vector.extract_strided_slice %162 {offsets = [0, 13], sizes = [5, 1], strides = [1, 1]} : vector<8x15xf32> to vector<5x1xf32>
    %227 = vector.extract_strided_slice %225 {offsets = [0, 0], sizes = [5, 1], strides = [1, 1]} : vector<5x4xf32> to vector<5x1xf32>
    %228 = vector.extract_strided_slice %224 {offsets = [0, 0], sizes = [1, 256], strides = [1, 1]} : vector<4x256xf32> to vector<1x256xf32>
    %229 = vector.broadcast %227 : vector<5x1xf32> to vector<5x256xf32>
    %230 = vector.broadcast %228 : vector<1x256xf32> to vector<5x256xf32>
    %231 = arith.mulf %229, %230 : vector<5x256xf32>
    %232 = vector.broadcast %226 : vector<5x1xf32> to vector<5x256xf32>
    %233 = arith.addf %231, %232 : vector<5x256xf32>
    %234 = vector.extract_strided_slice %225 {offsets = [0, 1], sizes = [5, 1], strides = [1, 1]} : vector<5x4xf32> to vector<5x1xf32>
    %235 = vector.extract_strided_slice %224 {offsets = [1, 0], sizes = [1, 256], strides = [1, 1]} : vector<4x256xf32> to vector<1x256xf32>
    %236 = vector.broadcast %234 : vector<5x1xf32> to vector<5x256xf32>
    %237 = vector.broadcast %235 : vector<1x256xf32> to vector<5x256xf32>
    %238 = arith.mulf %236, %237 : vector<5x256xf32>
    %239 = arith.addf %233, %238 : vector<5x256xf32>
    %240 = vector.extract_strided_slice %225 {offsets = [0, 2], sizes = [5, 1], strides = [1, 1]} : vector<5x4xf32> to vector<5x1xf32>
    %241 = vector.extract_strided_slice %224 {offsets = [2, 0], sizes = [1, 256], strides = [1, 1]} : vector<4x256xf32> to vector<1x256xf32>
    %242 = vector.broadcast %240 : vector<5x1xf32> to vector<5x256xf32>
    %243 = vector.broadcast %241 : vector<1x256xf32> to vector<5x256xf32>
    %244 = arith.mulf %242, %243 : vector<5x256xf32>
    %245 = arith.addf %239, %244 : vector<5x256xf32>
    %246 = vector.extract_strided_slice %225 {offsets = [0, 3], sizes = [5, 1], strides = [1, 1]} : vector<5x4xf32> to vector<5x1xf32>
    %247 = vector.extract_strided_slice %224 {offsets = [3, 0], sizes = [1, 256], strides = [1, 1]} : vector<4x256xf32> to vector<1x256xf32>
    %248 = vector.broadcast %246 : vector<5x1xf32> to vector<5x256xf32>
    %249 = vector.broadcast %247 : vector<1x256xf32> to vector<5x256xf32>
    %250 = arith.mulf %248, %249 : vector<5x256xf32>
    %251 = arith.addf %245, %250 : vector<5x256xf32>
    %252 = vector.extract_strided_slice %251 {offsets = [0, 0], sizes = [4, 256], strides = [1, 1]} : vector<5x256xf32> to vector<4x256xf32>
    %253 = arith.addf %252, %165 : vector<4x256xf32>
    %254 = vector.extract_strided_slice %251 {offsets = [4, 0], sizes = [1, 256], strides = [1, 1]} : vector<5x256xf32> to vector<1x256xf32>
    %255 = vector.extract_strided_slice %254 {offsets = [0, 7], sizes = [1, 249], strides = [1, 1]} : vector<1x256xf32> to vector<1x249xf32>
    %256 = vector.extract_strided_slice %254 {offsets = [0, 0], sizes = [1, 7], strides = [1, 1]} : vector<1x256xf32> to vector<1x7xf32>
    %257 = tpu.concatenate %255, %256 in 1 : vector<1x249xf32>, vector<1x7xf32> -> vector<1x256xf32>
    %258 = arith.addf %160, %257 : vector<1x256xf32>
    %259 = vector.extract_strided_slice %0 {offsets = [3, 0, 0], sizes = [1, 8, 15], strides = [1, 1, 1]} : vector<6x8x15xf32> to vector<1x8x15xf32>
    %260 = vector.shape_cast %259 : vector<1x8x15xf32> to vector<8x15xf32>
    %261 = vector.extract_strided_slice %253 {offsets = [0, 1], sizes = [4, 255], strides = [1, 1]} : vector<4x256xf32> to vector<4x255xf32>
    %262 = vector.extract_strided_slice %253 {offsets = [0, 0], sizes = [4, 1], strides = [1, 1]} : vector<4x256xf32> to vector<4x1xf32>
    %263 = tpu.concatenate %261, %262 in 1 : vector<4x255xf32>, vector<4x1xf32> -> vector<4x256xf32>
    %264 = vector.extract_strided_slice %260 {offsets = [0, 8], sizes = [8, 1], strides = [1, 1]} : vector<8x15xf32> to vector<8x1xf32>
    %265 = vector.extract_strided_slice %260 {offsets = [0, 0], sizes = [8, 1], strides = [1, 1]} : vector<8x15xf32> to vector<8x1xf32>
    %266 = vector.extract_strided_slice %253 {offsets = [0, 0], sizes = [1, 256], strides = [1, 1]} : vector<4x256xf32> to vector<1x256xf32>
    %267 = vector.broadcast %265 : vector<8x1xf32> to vector<8x256xf32>
    %268 = vector.broadcast %266 : vector<1x256xf32> to vector<8x256xf32>
    %269 = arith.mulf %267, %268 : vector<8x256xf32>
    %270 = vector.extract_strided_slice %260 {offsets = [0, 4], sizes = [8, 1], strides = [1, 1]} : vector<8x15xf32> to vector<8x1xf32>
    %271 = vector.extract_strided_slice %263 {offsets = [0, 0], sizes = [1, 256], strides = [1, 1]} : vector<4x256xf32> to vector<1x256xf32>
    %272 = vector.broadcast %270 : vector<8x1xf32> to vector<8x256xf32>
    %273 = vector.broadcast %271 : vector<1x256xf32> to vector<8x256xf32>
    %274 = arith.mulf %272, %273 : vector<8x256xf32>
    %275 = arith.addf %269, %274 : vector<8x256xf32>
    %276 = vector.broadcast %264 : vector<8x1xf32> to vector<8x256xf32>
    %277 = arith.addf %275, %276 : vector<8x256xf32>
    %278 = vector.extract_strided_slice %260 {offsets = [0, 1], sizes = [8, 1], strides = [1, 1]} : vector<8x15xf32> to vector<8x1xf32>
    %279 = vector.extract_strided_slice %253 {offsets = [1, 0], sizes = [1, 256], strides = [1, 1]} : vector<4x256xf32> to vector<1x256xf32>
    %280 = vector.broadcast %278 : vector<8x1xf32> to vector<8x256xf32>
    %281 = vector.broadcast %279 : vector<1x256xf32> to vector<8x256xf32>
    %282 = arith.mulf %280, %281 : vector<8x256xf32>
    %283 = arith.addf %277, %282 : vector<8x256xf32>
    %284 = vector.extract_strided_slice %260 {offsets = [0, 5], sizes = [8, 1], strides = [1, 1]} : vector<8x15xf32> to vector<8x1xf32>
    %285 = vector.extract_strided_slice %263 {offsets = [1, 0], sizes = [1, 256], strides = [1, 1]} : vector<4x256xf32> to vector<1x256xf32>
    %286 = vector.broadcast %284 : vector<8x1xf32> to vector<8x256xf32>
    %287 = vector.broadcast %285 : vector<1x256xf32> to vector<8x256xf32>
    %288 = arith.mulf %286, %287 : vector<8x256xf32>
    %289 = arith.addf %283, %288 : vector<8x256xf32>
    %290 = vector.extract_strided_slice %260 {offsets = [0, 2], sizes = [8, 1], strides = [1, 1]} : vector<8x15xf32> to vector<8x1xf32>
    %291 = vector.extract_strided_slice %253 {offsets = [2, 0], sizes = [1, 256], strides = [1, 1]} : vector<4x256xf32> to vector<1x256xf32>
    %292 = vector.broadcast %290 : vector<8x1xf32> to vector<8x256xf32>
    %293 = vector.broadcast %291 : vector<1x256xf32> to vector<8x256xf32>
    %294 = arith.mulf %292, %293 : vector<8x256xf32>
    %295 = arith.addf %289, %294 : vector<8x256xf32>
    %296 = vector.extract_strided_slice %260 {offsets = [0, 6], sizes = [8, 1], strides = [1, 1]} : vector<8x15xf32> to vector<8x1xf32>
    %297 = vector.extract_strided_slice %263 {offsets = [2, 0], sizes = [1, 256], strides = [1, 1]} : vector<4x256xf32> to vector<1x256xf32>
    %298 = vector.broadcast %296 : vector<8x1xf32> to vector<8x256xf32>
    %299 = vector.broadcast %297 : vector<1x256xf32> to vector<8x256xf32>
    %300 = arith.mulf %298, %299 : vector<8x256xf32>
    %301 = arith.addf %295, %300 : vector<8x256xf32>
    %302 = vector.extract_strided_slice %260 {offsets = [0, 3], sizes = [8, 1], strides = [1, 1]} : vector<8x15xf32> to vector<8x1xf32>
    %303 = vector.extract_strided_slice %253 {offsets = [3, 0], sizes = [1, 256], strides = [1, 1]} : vector<4x256xf32> to vector<1x256xf32>
    %304 = vector.broadcast %302 : vector<8x1xf32> to vector<8x256xf32>
    %305 = vector.broadcast %303 : vector<1x256xf32> to vector<8x256xf32>
    %306 = arith.mulf %304, %305 : vector<8x256xf32>
    %307 = arith.addf %301, %306 : vector<8x256xf32>
    %308 = vector.extract_strided_slice %260 {offsets = [0, 7], sizes = [8, 1], strides = [1, 1]} : vector<8x15xf32> to vector<8x1xf32>
    %309 = vector.extract_strided_slice %263 {offsets = [3, 0], sizes = [1, 256], strides = [1, 1]} : vector<4x256xf32> to vector<1x256xf32>
    %310 = vector.broadcast %308 : vector<8x1xf32> to vector<8x256xf32>
    %311 = vector.broadcast %309 : vector<1x256xf32> to vector<8x256xf32>
    %312 = arith.mulf %310, %311 : vector<8x256xf32>
    %313 = arith.addf %307, %312 : vector<8x256xf32>
    %314 = vector.extract_strided_slice %313 {offsets = [4, 0], sizes = [4, 256], strides = [1, 1]} : vector<8x256xf32> to vector<4x256xf32>
    %315 = math.tanh %314 : vector<4x256xf32>
    %316 = vector.extract_strided_slice %313 {offsets = [0, 0], sizes = [4, 256], strides = [1, 1]} : vector<8x256xf32> to vector<4x256xf32>
    %317 = arith.negf %316 : vector<4x256xf32>
    %318 = math.exp %317 : vector<4x256xf32>
    %cst_7 = arith.constant 1.000000e+00 : f32
    %319 = vector.broadcast %cst_7 : f32 to vector<4x256xf32>
    %320 = arith.addf %319, %318 : vector<4x256xf32>
    %321 = arith.divf %319, %320 : vector<4x256xf32>
    %322 = arith.mulf %315, %321 : vector<4x256xf32>
    %323 = vector.extract_strided_slice %260 {offsets = [0, 9], sizes = [5, 4], strides = [1, 1]} : vector<8x15xf32> to vector<5x4xf32>
    %324 = vector.extract_strided_slice %260 {offsets = [0, 13], sizes = [5, 1], strides = [1, 1]} : vector<8x15xf32> to vector<5x1xf32>
    %325 = vector.extract_strided_slice %323 {offsets = [0, 0], sizes = [5, 1], strides = [1, 1]} : vector<5x4xf32> to vector<5x1xf32>
    %326 = vector.extract_strided_slice %322 {offsets = [0, 0], sizes = [1, 256], strides = [1, 1]} : vector<4x256xf32> to vector<1x256xf32>
    %327 = vector.broadcast %325 : vector<5x1xf32> to vector<5x256xf32>
    %328 = vector.broadcast %326 : vector<1x256xf32> to vector<5x256xf32>
    %329 = arith.mulf %327, %328 : vector<5x256xf32>
    %330 = vector.broadcast %324 : vector<5x1xf32> to vector<5x256xf32>
    %331 = arith.addf %329, %330 : vector<5x256xf32>
    %332 = vector.extract_strided_slice %323 {offsets = [0, 1], sizes = [5, 1], strides = [1, 1]} : vector<5x4xf32> to vector<5x1xf32>
    %333 = vector.extract_strided_slice %322 {offsets = [1, 0], sizes = [1, 256], strides = [1, 1]} : vector<4x256xf32> to vector<1x256xf32>
    %334 = vector.broadcast %332 : vector<5x1xf32> to vector<5x256xf32>
    %335 = vector.broadcast %333 : vector<1x256xf32> to vector<5x256xf32>
    %336 = arith.mulf %334, %335 : vector<5x256xf32>
    %337 = arith.addf %331, %336 : vector<5x256xf32>
    %338 = vector.extract_strided_slice %323 {offsets = [0, 2], sizes = [5, 1], strides = [1, 1]} : vector<5x4xf32> to vector<5x1xf32>
    %339 = vector.extract_strided_slice %322 {offsets = [2, 0], sizes = [1, 256], strides = [1, 1]} : vector<4x256xf32> to vector<1x256xf32>
    %340 = vector.broadcast %338 : vector<5x1xf32> to vector<5x256xf32>
    %341 = vector.broadcast %339 : vector<1x256xf32> to vector<5x256xf32>
    %342 = arith.mulf %340, %341 : vector<5x256xf32>
    %343 = arith.addf %337, %342 : vector<5x256xf32>
    %344 = vector.extract_strided_slice %323 {offsets = [0, 3], sizes = [5, 1], strides = [1, 1]} : vector<5x4xf32> to vector<5x1xf32>
    %345 = vector.extract_strided_slice %322 {offsets = [3, 0], sizes = [1, 256], strides = [1, 1]} : vector<4x256xf32> to vector<1x256xf32>
    %346 = vector.broadcast %344 : vector<5x1xf32> to vector<5x256xf32>
    %347 = vector.broadcast %345 : vector<1x256xf32> to vector<5x256xf32>
    %348 = arith.mulf %346, %347 : vector<5x256xf32>
    %349 = arith.addf %343, %348 : vector<5x256xf32>
    %350 = vector.extract_strided_slice %349 {offsets = [0, 0], sizes = [4, 256], strides = [1, 1]} : vector<5x256xf32> to vector<4x256xf32>
    %351 = arith.addf %350, %263 : vector<4x256xf32>
    %352 = vector.extract_strided_slice %349 {offsets = [4, 0], sizes = [1, 256], strides = [1, 1]} : vector<5x256xf32> to vector<1x256xf32>
    %353 = vector.extract_strided_slice %352 {offsets = [0, 6], sizes = [1, 250], strides = [1, 1]} : vector<1x256xf32> to vector<1x250xf32>
    %354 = vector.extract_strided_slice %352 {offsets = [0, 0], sizes = [1, 6], strides = [1, 1]} : vector<1x256xf32> to vector<1x6xf32>
    %355 = tpu.concatenate %353, %354 in 1 : vector<1x250xf32>, vector<1x6xf32> -> vector<1x256xf32>
    %356 = arith.addf %258, %355 : vector<1x256xf32>
    %357 = vector.extract_strided_slice %0 {offsets = [4, 0, 0], sizes = [1, 8, 15], strides = [1, 1, 1]} : vector<6x8x15xf32> to vector<1x8x15xf32>
    %358 = vector.shape_cast %357 : vector<1x8x15xf32> to vector<8x15xf32>
    %359 = vector.extract_strided_slice %351 {offsets = [0, 2], sizes = [4, 254], strides = [1, 1]} : vector<4x256xf32> to vector<4x254xf32>
    %360 = vector.extract_strided_slice %351 {offsets = [0, 0], sizes = [4, 2], strides = [1, 1]} : vector<4x256xf32> to vector<4x2xf32>
    %361 = tpu.concatenate %359, %360 in 1 : vector<4x254xf32>, vector<4x2xf32> -> vector<4x256xf32>
    %362 = vector.extract_strided_slice %358 {offsets = [0, 8], sizes = [8, 1], strides = [1, 1]} : vector<8x15xf32> to vector<8x1xf32>
    %363 = vector.extract_strided_slice %358 {offsets = [0, 0], sizes = [8, 1], strides = [1, 1]} : vector<8x15xf32> to vector<8x1xf32>
    %364 = vector.extract_strided_slice %351 {offsets = [0, 0], sizes = [1, 256], strides = [1, 1]} : vector<4x256xf32> to vector<1x256xf32>
    %365 = vector.broadcast %363 : vector<8x1xf32> to vector<8x256xf32>
    %366 = vector.broadcast %364 : vector<1x256xf32> to vector<8x256xf32>
    %367 = arith.mulf %365, %366 : vector<8x256xf32>
    %368 = vector.extract_strided_slice %358 {offsets = [0, 4], sizes = [8, 1], strides = [1, 1]} : vector<8x15xf32> to vector<8x1xf32>
    %369 = vector.extract_strided_slice %361 {offsets = [0, 0], sizes = [1, 256], strides = [1, 1]} : vector<4x256xf32> to vector<1x256xf32>
    %370 = vector.broadcast %368 : vector<8x1xf32> to vector<8x256xf32>
    %371 = vector.broadcast %369 : vector<1x256xf32> to vector<8x256xf32>
    %372 = arith.mulf %370, %371 : vector<8x256xf32>
    %373 = arith.addf %367, %372 : vector<8x256xf32>
    %374 = vector.broadcast %362 : vector<8x1xf32> to vector<8x256xf32>
    %375 = arith.addf %373, %374 : vector<8x256xf32>
    %376 = vector.extract_strided_slice %358 {offsets = [0, 1], sizes = [8, 1], strides = [1, 1]} : vector<8x15xf32> to vector<8x1xf32>
    %377 = vector.extract_strided_slice %351 {offsets = [1, 0], sizes = [1, 256], strides = [1, 1]} : vector<4x256xf32> to vector<1x256xf32>
    %378 = vector.broadcast %376 : vector<8x1xf32> to vector<8x256xf32>
    %379 = vector.broadcast %377 : vector<1x256xf32> to vector<8x256xf32>
    %380 = arith.mulf %378, %379 : vector<8x256xf32>
    %381 = arith.addf %375, %380 : vector<8x256xf32>
    %382 = vector.extract_strided_slice %358 {offsets = [0, 5], sizes = [8, 1], strides = [1, 1]} : vector<8x15xf32> to vector<8x1xf32>
    %383 = vector.extract_strided_slice %361 {offsets = [1, 0], sizes = [1, 256], strides = [1, 1]} : vector<4x256xf32> to vector<1x256xf32>
    %384 = vector.broadcast %382 : vector<8x1xf32> to vector<8x256xf32>
    %385 = vector.broadcast %383 : vector<1x256xf32> to vector<8x256xf32>
    %386 = arith.mulf %384, %385 : vector<8x256xf32>
    %387 = arith.addf %381, %386 : vector<8x256xf32>
    %388 = vector.extract_strided_slice %358 {offsets = [0, 2], sizes = [8, 1], strides = [1, 1]} : vector<8x15xf32> to vector<8x1xf32>
    %389 = vector.extract_strided_slice %351 {offsets = [2, 0], sizes = [1, 256], strides = [1, 1]} : vector<4x256xf32> to vector<1x256xf32>
    %390 = vector.broadcast %388 : vector<8x1xf32> to vector<8x256xf32>
    %391 = vector.broadcast %389 : vector<1x256xf32> to vector<8x256xf32>
    %392 = arith.mulf %390, %391 : vector<8x256xf32>
    %393 = arith.addf %387, %392 : vector<8x256xf32>
    %394 = vector.extract_strided_slice %358 {offsets = [0, 6], sizes = [8, 1], strides = [1, 1]} : vector<8x15xf32> to vector<8x1xf32>
    %395 = vector.extract_strided_slice %361 {offsets = [2, 0], sizes = [1, 256], strides = [1, 1]} : vector<4x256xf32> to vector<1x256xf32>
    %396 = vector.broadcast %394 : vector<8x1xf32> to vector<8x256xf32>
    %397 = vector.broadcast %395 : vector<1x256xf32> to vector<8x256xf32>
    %398 = arith.mulf %396, %397 : vector<8x256xf32>
    %399 = arith.addf %393, %398 : vector<8x256xf32>
    %400 = vector.extract_strided_slice %358 {offsets = [0, 3], sizes = [8, 1], strides = [1, 1]} : vector<8x15xf32> to vector<8x1xf32>
    %401 = vector.extract_strided_slice %351 {offsets = [3, 0], sizes = [1, 256], strides = [1, 1]} : vector<4x256xf32> to vector<1x256xf32>
    %402 = vector.broadcast %400 : vector<8x1xf32> to vector<8x256xf32>
    %403 = vector.broadcast %401 : vector<1x256xf32> to vector<8x256xf32>
    %404 = arith.mulf %402, %403 : vector<8x256xf32>
    %405 = arith.addf %399, %404 : vector<8x256xf32>
    %406 = vector.extract_strided_slice %358 {offsets = [0, 7], sizes = [8, 1], strides = [1, 1]} : vector<8x15xf32> to vector<8x1xf32>
    %407 = vector.extract_strided_slice %361 {offsets = [3, 0], sizes = [1, 256], strides = [1, 1]} : vector<4x256xf32> to vector<1x256xf32>
    %408 = vector.broadcast %406 : vector<8x1xf32> to vector<8x256xf32>
    %409 = vector.broadcast %407 : vector<1x256xf32> to vector<8x256xf32>
    %410 = arith.mulf %408, %409 : vector<8x256xf32>
    %411 = arith.addf %405, %410 : vector<8x256xf32>
    %412 = vector.extract_strided_slice %411 {offsets = [4, 0], sizes = [4, 256], strides = [1, 1]} : vector<8x256xf32> to vector<4x256xf32>
    %413 = math.tanh %412 : vector<4x256xf32>
    %414 = vector.extract_strided_slice %411 {offsets = [0, 0], sizes = [4, 256], strides = [1, 1]} : vector<8x256xf32> to vector<4x256xf32>
    %415 = arith.negf %414 : vector<4x256xf32>
    %416 = math.exp %415 : vector<4x256xf32>
    %cst_8 = arith.constant 1.000000e+00 : f32
    %417 = vector.broadcast %cst_8 : f32 to vector<4x256xf32>
    %418 = arith.addf %417, %416 : vector<4x256xf32>
    %419 = arith.divf %417, %418 : vector<4x256xf32>
    %420 = arith.mulf %413, %419 : vector<4x256xf32>
    %421 = vector.extract_strided_slice %358 {offsets = [0, 9], sizes = [5, 4], strides = [1, 1]} : vector<8x15xf32> to vector<5x4xf32>
    %422 = vector.extract_strided_slice %358 {offsets = [0, 13], sizes = [5, 1], strides = [1, 1]} : vector<8x15xf32> to vector<5x1xf32>
    %423 = vector.extract_strided_slice %421 {offsets = [0, 0], sizes = [5, 1], strides = [1, 1]} : vector<5x4xf32> to vector<5x1xf32>
    %424 = vector.extract_strided_slice %420 {offsets = [0, 0], sizes = [1, 256], strides = [1, 1]} : vector<4x256xf32> to vector<1x256xf32>
    %425 = vector.broadcast %423 : vector<5x1xf32> to vector<5x256xf32>
    %426 = vector.broadcast %424 : vector<1x256xf32> to vector<5x256xf32>
    %427 = arith.mulf %425, %426 : vector<5x256xf32>
    %428 = vector.broadcast %422 : vector<5x1xf32> to vector<5x256xf32>
    %429 = arith.addf %427, %428 : vector<5x256xf32>
    %430 = vector.extract_strided_slice %421 {offsets = [0, 1], sizes = [5, 1], strides = [1, 1]} : vector<5x4xf32> to vector<5x1xf32>
    %431 = vector.extract_strided_slice %420 {offsets = [1, 0], sizes = [1, 256], strides = [1, 1]} : vector<4x256xf32> to vector<1x256xf32>
    %432 = vector.broadcast %430 : vector<5x1xf32> to vector<5x256xf32>
    %433 = vector.broadcast %431 : vector<1x256xf32> to vector<5x256xf32>
    %434 = arith.mulf %432, %433 : vector<5x256xf32>
    %435 = arith.addf %429, %434 : vector<5x256xf32>
    %436 = vector.extract_strided_slice %421 {offsets = [0, 2], sizes = [5, 1], strides = [1, 1]} : vector<5x4xf32> to vector<5x1xf32>
    %437 = vector.extract_strided_slice %420 {offsets = [2, 0], sizes = [1, 256], strides = [1, 1]} : vector<4x256xf32> to vector<1x256xf32>
    %438 = vector.broadcast %436 : vector<5x1xf32> to vector<5x256xf32>
    %439 = vector.broadcast %437 : vector<1x256xf32> to vector<5x256xf32>
    %440 = arith.mulf %438, %439 : vector<5x256xf32>
    %441 = arith.addf %435, %440 : vector<5x256xf32>
    %442 = vector.extract_strided_slice %421 {offsets = [0, 3], sizes = [5, 1], strides = [1, 1]} : vector<5x4xf32> to vector<5x1xf32>
    %443 = vector.extract_strided_slice %420 {offsets = [3, 0], sizes = [1, 256], strides = [1, 1]} : vector<4x256xf32> to vector<1x256xf32>
    %444 = vector.broadcast %442 : vector<5x1xf32> to vector<5x256xf32>
    %445 = vector.broadcast %443 : vector<1x256xf32> to vector<5x256xf32>
    %446 = arith.mulf %444, %445 : vector<5x256xf32>
    %447 = arith.addf %441, %446 : vector<5x256xf32>
    %448 = vector.extract_strided_slice %447 {offsets = [0, 0], sizes = [4, 256], strides = [1, 1]} : vector<5x256xf32> to vector<4x256xf32>
    %449 = arith.addf %448, %361 : vector<4x256xf32>
    %450 = vector.extract_strided_slice %447 {offsets = [4, 0], sizes = [1, 256], strides = [1, 1]} : vector<5x256xf32> to vector<1x256xf32>
    %451 = vector.extract_strided_slice %450 {offsets = [0, 4], sizes = [1, 252], strides = [1, 1]} : vector<1x256xf32> to vector<1x252xf32>
    %452 = vector.extract_strided_slice %450 {offsets = [0, 0], sizes = [1, 4], strides = [1, 1]} : vector<1x256xf32> to vector<1x4xf32>
    %453 = tpu.concatenate %451, %452 in 1 : vector<1x252xf32>, vector<1x4xf32> -> vector<1x256xf32>
    %454 = arith.addf %356, %453 : vector<1x256xf32>
    %455 = vector.extract_strided_slice %0 {offsets = [5, 0, 0], sizes = [1, 8, 15], strides = [1, 1, 1]} : vector<6x8x15xf32> to vector<1x8x15xf32>
    %456 = vector.shape_cast %455 : vector<1x8x15xf32> to vector<8x15xf32>
    %457 = vector.extract_strided_slice %449 {offsets = [0, 4], sizes = [4, 252], strides = [1, 1]} : vector<4x256xf32> to vector<4x252xf32>
    %458 = vector.extract_strided_slice %449 {offsets = [0, 0], sizes = [4, 4], strides = [1, 1]} : vector<4x256xf32> to vector<4x4xf32>
    %459 = tpu.concatenate %457, %458 in 1 : vector<4x252xf32>, vector<4x4xf32> -> vector<4x256xf32>
    %460 = vector.extract_strided_slice %456 {offsets = [0, 8], sizes = [8, 1], strides = [1, 1]} : vector<8x15xf32> to vector<8x1xf32>
    %461 = vector.extract_strided_slice %456 {offsets = [0, 0], sizes = [8, 1], strides = [1, 1]} : vector<8x15xf32> to vector<8x1xf32>
    %462 = vector.extract_strided_slice %449 {offsets = [0, 0], sizes = [1, 256], strides = [1, 1]} : vector<4x256xf32> to vector<1x256xf32>
    %463 = vector.broadcast %461 : vector<8x1xf32> to vector<8x256xf32>
    %464 = vector.broadcast %462 : vector<1x256xf32> to vector<8x256xf32>
    %465 = arith.mulf %463, %464 : vector<8x256xf32>
    %466 = vector.extract_strided_slice %456 {offsets = [0, 4], sizes = [8, 1], strides = [1, 1]} : vector<8x15xf32> to vector<8x1xf32>
    %467 = vector.extract_strided_slice %459 {offsets = [0, 0], sizes = [1, 256], strides = [1, 1]} : vector<4x256xf32> to vector<1x256xf32>
    %468 = vector.broadcast %466 : vector<8x1xf32> to vector<8x256xf32>
    %469 = vector.broadcast %467 : vector<1x256xf32> to vector<8x256xf32>
    %470 = arith.mulf %468, %469 : vector<8x256xf32>
    %471 = arith.addf %465, %470 : vector<8x256xf32>
    %472 = vector.broadcast %460 : vector<8x1xf32> to vector<8x256xf32>
    %473 = arith.addf %471, %472 : vector<8x256xf32>
    %474 = vector.extract_strided_slice %456 {offsets = [0, 1], sizes = [8, 1], strides = [1, 1]} : vector<8x15xf32> to vector<8x1xf32>
    %475 = vector.extract_strided_slice %449 {offsets = [1, 0], sizes = [1, 256], strides = [1, 1]} : vector<4x256xf32> to vector<1x256xf32>
    %476 = vector.broadcast %474 : vector<8x1xf32> to vector<8x256xf32>
    %477 = vector.broadcast %475 : vector<1x256xf32> to vector<8x256xf32>
    %478 = arith.mulf %476, %477 : vector<8x256xf32>
    %479 = arith.addf %473, %478 : vector<8x256xf32>
    %480 = vector.extract_strided_slice %456 {offsets = [0, 5], sizes = [8, 1], strides = [1, 1]} : vector<8x15xf32> to vector<8x1xf32>
    %481 = vector.extract_strided_slice %459 {offsets = [1, 0], sizes = [1, 256], strides = [1, 1]} : vector<4x256xf32> to vector<1x256xf32>
    %482 = vector.broadcast %480 : vector<8x1xf32> to vector<8x256xf32>
    %483 = vector.broadcast %481 : vector<1x256xf32> to vector<8x256xf32>
    %484 = arith.mulf %482, %483 : vector<8x256xf32>
    %485 = arith.addf %479, %484 : vector<8x256xf32>
    %486 = vector.extract_strided_slice %456 {offsets = [0, 2], sizes = [8, 1], strides = [1, 1]} : vector<8x15xf32> to vector<8x1xf32>
    %487 = vector.extract_strided_slice %449 {offsets = [2, 0], sizes = [1, 256], strides = [1, 1]} : vector<4x256xf32> to vector<1x256xf32>
    %488 = vector.broadcast %486 : vector<8x1xf32> to vector<8x256xf32>
    %489 = vector.broadcast %487 : vector<1x256xf32> to vector<8x256xf32>
    %490 = arith.mulf %488, %489 : vector<8x256xf32>
    %491 = arith.addf %485, %490 : vector<8x256xf32>
    %492 = vector.extract_strided_slice %456 {offsets = [0, 6], sizes = [8, 1], strides = [1, 1]} : vector<8x15xf32> to vector<8x1xf32>
    %493 = vector.extract_strided_slice %459 {offsets = [2, 0], sizes = [1, 256], strides = [1, 1]} : vector<4x256xf32> to vector<1x256xf32>
    %494 = vector.broadcast %492 : vector<8x1xf32> to vector<8x256xf32>
    %495 = vector.broadcast %493 : vector<1x256xf32> to vector<8x256xf32>
    %496 = arith.mulf %494, %495 : vector<8x256xf32>
    %497 = arith.addf %491, %496 : vector<8x256xf32>
    %498 = vector.extract_strided_slice %456 {offsets = [0, 3], sizes = [8, 1], strides = [1, 1]} : vector<8x15xf32> to vector<8x1xf32>
    %499 = vector.extract_strided_slice %449 {offsets = [3, 0], sizes = [1, 256], strides = [1, 1]} : vector<4x256xf32> to vector<1x256xf32>
    %500 = vector.broadcast %498 : vector<8x1xf32> to vector<8x256xf32>
    %501 = vector.broadcast %499 : vector<1x256xf32> to vector<8x256xf32>
    %502 = arith.mulf %500, %501 : vector<8x256xf32>
    %503 = arith.addf %497, %502 : vector<8x256xf32>
    %504 = vector.extract_strided_slice %456 {offsets = [0, 7], sizes = [8, 1], strides = [1, 1]} : vector<8x15xf32> to vector<8x1xf32>
    %505 = vector.extract_strided_slice %459 {offsets = [3, 0], sizes = [1, 256], strides = [1, 1]} : vector<4x256xf32> to vector<1x256xf32>
    %506 = vector.broadcast %504 : vector<8x1xf32> to vector<8x256xf32>
    %507 = vector.broadcast %505 : vector<1x256xf32> to vector<8x256xf32>
    %508 = arith.mulf %506, %507 : vector<8x256xf32>
    %509 = arith.addf %503, %508 : vector<8x256xf32>
    %510 = vector.extract_strided_slice %509 {offsets = [4, 0], sizes = [4, 256], strides = [1, 1]} : vector<8x256xf32> to vector<4x256xf32>
    %511 = math.tanh %510 : vector<4x256xf32>
    %512 = vector.extract_strided_slice %509 {offsets = [0, 0], sizes = [4, 256], strides = [1, 1]} : vector<8x256xf32> to vector<4x256xf32>
    %513 = arith.negf %512 : vector<4x256xf32>
    %514 = math.exp %513 : vector<4x256xf32>
    %cst_9 = arith.constant 1.000000e+00 : f32
    %515 = vector.broadcast %cst_9 : f32 to vector<4x256xf32>
    %516 = arith.addf %515, %514 : vector<4x256xf32>
    %517 = arith.divf %515, %516 : vector<4x256xf32>
    %518 = arith.mulf %511, %517 : vector<4x256xf32>
    %519 = vector.extract_strided_slice %456 {offsets = [0, 9], sizes = [5, 4], strides = [1, 1]} : vector<8x15xf32> to vector<5x4xf32>
    %520 = vector.extract_strided_slice %456 {offsets = [0, 13], sizes = [5, 1], strides = [1, 1]} : vector<8x15xf32> to vector<5x1xf32>
    %521 = vector.extract_strided_slice %519 {offsets = [0, 0], sizes = [5, 1], strides = [1, 1]} : vector<5x4xf32> to vector<5x1xf32>
    %522 = vector.extract_strided_slice %518 {offsets = [0, 0], sizes = [1, 256], strides = [1, 1]} : vector<4x256xf32> to vector<1x256xf32>
    %523 = vector.broadcast %521 : vector<5x1xf32> to vector<5x256xf32>
    %524 = vector.broadcast %522 : vector<1x256xf32> to vector<5x256xf32>
    %525 = arith.mulf %523, %524 : vector<5x256xf32>
    %526 = vector.broadcast %520 : vector<5x1xf32> to vector<5x256xf32>
    %527 = arith.addf %525, %526 : vector<5x256xf32>
    %528 = vector.extract_strided_slice %519 {offsets = [0, 1], sizes = [5, 1], strides = [1, 1]} : vector<5x4xf32> to vector<5x1xf32>
    %529 = vector.extract_strided_slice %518 {offsets = [1, 0], sizes = [1, 256], strides = [1, 1]} : vector<4x256xf32> to vector<1x256xf32>
    %530 = vector.broadcast %528 : vector<5x1xf32> to vector<5x256xf32>
    %531 = vector.broadcast %529 : vector<1x256xf32> to vector<5x256xf32>
    %532 = arith.mulf %530, %531 : vector<5x256xf32>
    %533 = arith.addf %527, %532 : vector<5x256xf32>
    %534 = vector.extract_strided_slice %519 {offsets = [0, 2], sizes = [5, 1], strides = [1, 1]} : vector<5x4xf32> to vector<5x1xf32>
    %535 = vector.extract_strided_slice %518 {offsets = [2, 0], sizes = [1, 256], strides = [1, 1]} : vector<4x256xf32> to vector<1x256xf32>
    %536 = vector.broadcast %534 : vector<5x1xf32> to vector<5x256xf32>
    %537 = vector.broadcast %535 : vector<1x256xf32> to vector<5x256xf32>
    %538 = arith.mulf %536, %537 : vector<5x256xf32>
    %539 = arith.addf %533, %538 : vector<5x256xf32>
    %540 = vector.extract_strided_slice %519 {offsets = [0, 3], sizes = [5, 1], strides = [1, 1]} : vector<5x4xf32> to vector<5x1xf32>
    %541 = vector.extract_strided_slice %518 {offsets = [3, 0], sizes = [1, 256], strides = [1, 1]} : vector<4x256xf32> to vector<1x256xf32>
    %542 = vector.broadcast %540 : vector<5x1xf32> to vector<5x256xf32>
    %543 = vector.broadcast %541 : vector<1x256xf32> to vector<5x256xf32>
    %544 = arith.mulf %542, %543 : vector<5x256xf32>
    %545 = arith.addf %539, %544 : vector<5x256xf32>
    %546 = vector.extract_strided_slice %545 {offsets = [4, 0], sizes = [1, 256], strides = [1, 1]} : vector<5x256xf32> to vector<1x256xf32>
    %547 = arith.addf %454, %546 : vector<1x256xf32>
    %548 = vector.extract_strided_slice %0 {offsets = [0, 0, 14], sizes = [1, 1, 1], strides = [1, 1, 1]} : vector<6x8x15xf32> to vector<1x1x1xf32>
    %549 = vector.shape_cast %548 : vector<1x1x1xf32> to vector<1x1xf32>
    %550 = vector.broadcast %549 : vector<1x1xf32> to vector<1x256xf32>
    %551 = arith.addf %547, %550 : vector<1x256xf32>
    %c0_10 = arith.constant 0 : index
    %c0_11 = arith.constant 0 : index
    %c0_12 = arith.constant 0 : index
    %552 = vector.load %arg3[%c0_10, %c0_11, %c0_12] : memref<1x1x256xf32, #tpu.memory_space<vmem>>, vector<1x1x256xf32>
    %553 = vector.shape_cast %552 : vector<1x1x256xf32> to vector<1x256xf32>
    %554 = vector.shape_cast %551 : vector<1x256xf32> to vector<1x1x256xf32>
    tpu.vector_store %arg3[%c0_10, %c0_11, %c0_12], %554 {strides = array<i32>} : memref<1x1x256xf32, #tpu.memory_space<vmem>>, vector<1x1x256xf32>,
    return
  }
  func.func @transform_0(%arg0: i32) -> (i32, i32, i32) {
    %c0_i32 = arith.constant 0 : i32
    %c0_i32_0 = arith.constant 0 : i32
    %c0_i32_1 = arith.constant 0 : i32
    return %arg0, %c0_i32, %c0_i32_0 : i32, i32, i32
  }
  func.func @transform_1(%arg0: i32) -> (i32, i32, i32) {
    %c0_i32 = arith.constant 0 : i32
    %c0_i32_0 = arith.constant 0 : i32
    %c0_i32_1 = arith.constant 0 : i32
    %c0_i32_2 = arith.constant 0 : i32
    return %c0_i32, %c0_i32_0, %c0_i32_1 : i32, i32, i32
  }
  func.func @transform_2(%arg0: i32) -> (i32, i32, i32) {
    %c0_i32 = arith.constant 0 : i32
    %c0_i32_0 = arith.constant 0 : i32
    %c0_i32_1 = arith.constant 0 : i32
    return %arg0, %c0_i32, %c0_i32_0 : i32, i32, i32
  }
}

</mosaic_0001>

<llo_original>
// kernel: tpu_custom_call.1
$region0: #{tpu_custom_call.1}
  #allocation0 [shape = 'u32[]', space=smem, size = 0x4, offset = 0x4, fixed_abs, tag = 'smem constant byte address 0x4 - core index']
  #allocation1 [shape = 'u32[144,128]{1,0:T(1,128)}', space=vmem, size = 0x12000, scoped, tag = 'internal scratch']
  %s0 = inlined_call_operand.hbm [shape: f32[1,1,256], index: 0, kind: input, shape index: {}]
  %s1 = inlined_call_operand.hbm [shape: f32[6,8,15], index: 1, kind: input, shape index: {}]
  %s2 = inlined_call_operand.hbm [shape: f32[1,1,256], index: 2, kind: output, shape index: {}]
  %s3 = sld [smem:[#allocation0]]
  $region26: #{tpu_custom_call.1} parent=0
    _
  %s5 = ssub.s32 1, %s3
  %s6 = scalar_select 0, %s5, %s3
  $region1: #{tpu_custom_call.1} parent=0
    #allocation2 [shape = 'u8[1024]{0}', space=vmem, size = 0x400, scoped, tag = 'input window, operand 0, single buffered']
    #allocation3 [shape = 's32[1]{0}', space=sflag, size = 0x4, scoped, tag = 'scoped memory for tpu_custom_call.1']
    #allocation4 [shape = 's32[1]{0}', space=sflag, size = 0x4, scoped, tag = 'scoped memory for tpu_custom_call.1']
    #allocation5 [shape = 'u8[24576]{0}', space=vmem, size = 0x6000, scoped, tag = 'input window, operand 1, single buffered']
    #allocation6 [shape = 's32[1]{0}', space=sflag, size = 0x4, scoped, tag = 'scoped memory for tpu_custom_call.1']
    #allocation7 [shape = 'u8[1024]{0}', space=vmem, size = 0x400, scoped, tag = 'output window, operand 0, single buffered']
    %7 = vsyncpa [#allocation3], 0
    %8 = vsyncpa [#allocation6], 0
    %9 = vsyncpa [#allocation4], 0
    // Predicated region
    $region2: #{tpu_custom_call.1} parent=1 // pred_check
      _
    $region3: #{tpu_custom_call.1} parent=1 // pred_check_branch
      %11 = sbr.rel (0) target = $region5
    $region4: #{tpu_custom_call.1} parent=1 // pred_region
      %s13 = ssub.s32 32, 32
      %14 = vsyncadd [#allocation3], %s13
      %s16 = sshll.u32 [#allocation2], 4
      %s17 = int_to_ptr.vmem [resolvable:$true] %s16
      %19 = dma.hbm_to_vmem [thread:$0]  %s0, 32, %s17, [#allocation3]
    $region5: #{tpu_custom_call.1} parent=1 // pred_fallthru
      _
    // Predicated region
    $region6: #{tpu_custom_call.1} parent=1 // pred_check
      _
    $region7: #{tpu_custom_call.1} parent=1 // pred_check_branch
      %21 = sbr.rel (0) target = $region9
    $region8: #{tpu_custom_call.1} parent=1 // pred_region
      %s23 = ssub.s32 768, 768
      %24 = vsyncadd [#allocation6], %s23
      %s25 = sshll.u32 [#allocation5], 4
      %s26 = int_to_ptr.vmem [resolvable:$true] %s25
      %31 = dma.hbm_to_vmem [thread:$0]  %s1, 768, %s26, [#allocation6], 128, 128, 8
    $region9: #{tpu_custom_call.1} parent=1 // pred_fallthru
      _
    // Predicated region
    $region10: #{tpu_custom_call.1} parent=1 // pred_check
      _
    $region11: #{tpu_custom_call.1} parent=1 // pred_check_branch
      %33 = sbr.rel (0) target = $region13
    $region12: #{tpu_custom_call.1} parent=1 // pred_region
      %34 = dma.done [#allocation3], 32
    $region13: #{tpu_custom_call.1} parent=1 // pred_fallthru
      _
    // Predicated region
    $region14: #{tpu_custom_call.1} parent=1 // pred_check
      _
    $region15: #{tpu_custom_call.1} parent=1 // pred_check_branch
      %36 = sbr.rel (0) target = $region17
    $region16: #{tpu_custom_call.1} parent=1 // pred_region
      %37 = dma.done [#allocation6], 768
    $region17: #{tpu_custom_call.1} parent=1 // pred_fallthru
      _
    %v38 = vld [vmem:[#allocation5] sm:$0xff]
    %v39 = vld [vmem:[#allocation5 + $0x8] sm:$0xff]
    %v40 = vld [vmem:[#allocation5 + $0x10] sm:$0xff]
    %v41 = vld [vmem:[#allocation5 + $0x18] sm:$0xff]
    %v42 = vld [vmem:[#allocation5 + $0x20] sm:$0xff]
    %v43 = vld [vmem:[#allocation5 + $0x28] sm:$0xff]
    %v44 = vld [vmem:[#allocation2] sm:$0x3]
    %v46 = vlaneseq
    %v47 = vshrl.u32 %v46, 7
    %v48 = vsub.s32 0, %v47
    %v49 = vrot.slane %v44, %v48
    %v50 = vlaneseq
    %v51 = vshrl.u32 %v50, 7
    %v52 = vsub.s32 1, %v51
    %v53 = vrot.slane %v44, %v52
    %54 = vrot.lane.b32.xlu0 %v49, 127
    %v55 = vpop.permute.xlu0 %54
    %56 = vrot.lane.b32.xlu0 %v53, 127
    %v57 = vpop.permute.xlu0 %56
    %vm58 = vcmask 1039360
    %v59 = vsel %vm58, %v55, %v57
    %v63 = vsel %vm58, %v57, %v55
    %65 = vset.pattern.permute.xlu0 0
    %66 = vperm.xlu0 %65, %v38
    %v67 = vpop.permute.xlu0 %66
    %v71 = vmul.f32 %v67, %v49
    %v72 = vmul.f32 %v67, %v53
    %73 = vset.pattern.permute.xlu0 4
    %74 = vperm.xlu0 %73, %v38
    %v75 = vpop.permute.xlu0 %74
    %v77 = vlaneseq
    %v78 = vshrl.u32 %v77, 7
    %v79 = vsub.s32 0, %v78
    %v80 = vrot.slane %v59, %v79
    %v81 = vlaneseq
    %v82 = vshrl.u32 %v81, 7
    %v83 = vsub.s32 0, %v82
    %v84 = vrot.slane %v63, %v83
    %v85 = vmul.f32 %v75, %v80
    %v86 = vmul.f32 %v75, %v84
    %v87 = vadd.f32 %v71, %v85
    %v88 = vadd.f32 %v72, %v86
    %89 = vset.pattern.permute.xlu0 8
    %90 = vperm.xlu0 %89, %v38
    %v91 = vpop.permute.xlu0 %90
    %v93 = vadd.f32 %v87, %v91
    %v94 = vadd.f32 %v88, %v91
    %v95 = vtanh.pop %v93
    %v96 = vtanh.pop %v94
    %v97 = vxor.u32 %v93, 2147483648
    %v98 = vxor.u32 %v94, 2147483648
    %v99 = vmul.f32 %v97, 1.442695
    %v100 = vpow.pop %v99
    %v101 = vmul.f32 %v98, 1.442695
    %v102 = vpow.pop %v101
    %v103 = vadd.f32 %v100, 1.0
    %v104 = vadd.f32 %v102, 1.0
    %v105 = vrcp.pop %v103
    %v106 = vmul.f32 1.0, %v105
    %v107 = vrcp.pop %v104
    %v108 = vmul.f32 1.0, %v107
    %v111 = vrot.slane %v106, 4
    %v112 = vrot.slane %v108, 4
    %v115 = vmul.f32 %v95, %v111
    %v116 = vmul.f32 %v96, %v112
    %117 = vset.pattern.permute.xlu0 9
    %118 = vperm.xlu0 %117, %v38
    %v119 = vpop.permute.xlu0 %118
    %v121 = vlaneseq
    %v122 = vshrl.u32 %v121, 7
    %v123 = vsub.s32 4, %v122
    %v124 = vrot.slane %v115, %v123
    %v125 = vlaneseq
    %v126 = vshrl.u32 %v125, 7
    %v127 = vsub.s32 4, %v126
    %v128 = vrot.slane %v116, %v127
    %v129 = vmul.f32 %v119, %v124
    %v130 = vmul.f32 %v119, %v128
    %131 = vset.pattern.permute.xlu0 13
    %132 = vperm.xlu0 %131, %v38
    %v133 = vpop.permute.xlu0 %132
    %v135 = vadd.f32 %v129, %v133
    %v136 = vadd.f32 %v130, %v133
    %137 = vset.pattern.permute.xlu0 10
    %138 = vperm.xlu0 %137, %v38
    %v139 = vpop.permute.xlu0 %138
    %v141 = vlaneseq
    %v142 = vshrl.u32 %v141, 7
    %v143 = vsub.s32 5, %v142
    %v144 = vrot.slane %v115, %v143
    %v145 = vlaneseq
    %v146 = vshrl.u32 %v145, 7
    %v147 = vsub.s32 5, %v146
    %v148 = vrot.slane %v116, %v147
    %v149 = vmul.f32 %v139, %v144
    %v150 = vmul.f32 %v139, %v148
    %v151 = vadd.f32 %v135, %v149
    %v152 = vadd.f32 %v136, %v150
    %153 = vset.pattern.permute.xlu0 11
    %154 = vperm.xlu0 %153, %v38
    %v155 = vpop.permute.xlu0 %154
    %v157 = vlaneseq
    %v158 = vshrl.u32 %v157, 7
    %v159 = vsub.s32 6, %v158
    %v160 = vrot.slane %v115, %v159
    %v161 = vlaneseq
    %v162 = vshrl.u32 %v161, 7
    %v163 = vsub.s32 6, %v162
    %v164 = vrot.slane %v116, %v163
    %v165 = vmul.f32 %v155, %v160
    %v166 = vmul.f32 %v155, %v164
    %v167 = vadd.f32 %v151, %v165
    %v168 = vadd.f32 %v152, %v166
    %169 = vset.pattern.permute.xlu0 12
    %170 = vperm.xlu0 %169, %v38
    %v171 = vpop.permute.xlu0 %170
    %v173 = vlaneseq
    %v174 = vshrl.u32 %v173, 7
    %v175 = vsub.s32 7, %v174
    %v176 = vrot.slane %v115, %v175
    %v177 = vlaneseq
    %v178 = vshrl.u32 %v177, 7
    %v179 = vsub.s32 7, %v178
    %v180 = vrot.slane %v116, %v179
    %v181 = vmul.f32 %v171, %v176
    %v182 = vmul.f32 %v171, %v180
    %v183 = vadd.f32 %v167, %v181
    %v184 = vadd.f32 %v168, %v182
    %v185 = vadd.f32 %v183, %v80
    %v186 = vadd.f32 %v184, %v84
    %189 = vrot.lane.b32.xlu0 %v183, 115
    %v190 = vpop.permute.xlu0 %189
    %191 = vrot.lane.b32.xlu0 %v184, 115
    %v192 = vpop.permute.xlu0 %191
    %vm193 = vcmask 941056
    %v194 = vsel %vm193, %v190, %v192
    %v198 = vsel %vm193, %v192, %v190
    %201 = vrot.lane.b32.xlu0 %v185, 126
    %v202 = vpop.permute.xlu0 %201
    %203 = vrot.lane.b32.xlu0 %v186, 126
    %v204 = vpop.permute.xlu0 %203
    %vm205 = vcmask 1031168
    %v206 = vsel %vm205, %v202, %v204
    %v210 = vsel %vm205, %v204, %v202
    %212 = vset.pattern.permute.xlu0 0
    %213 = vperm.xlu0 %212, %v39
    %v214 = vpop.permute.xlu0 %213
    %v216 = vlaneseq
    %v217 = vshrl.u32 %v216, 7
    %v218 = vsub.s32 0, %v217
    %v219 = vrot.slane %v185, %v218
    %v220 = vlaneseq
    %v221 = vshrl.u32 %v220, 7
    %v222 = vsub.s32 0, %v221
    %v223 = vrot.slane %v186, %v222
    %v224 = vmul.f32 %v214, %v219
    %v225 = vmul.f32 %v214, %v223
    %226 = vset.pattern.permute.xlu0 4
    %227 = vperm.xlu0 %226, %v39
    %v228 = vpop.permute.xlu0 %227
    %v230 = vlaneseq
    %v231 = vshrl.u32 %v230, 7
    %v232 = vsub.s32 0, %v231
    %v233 = vrot.slane %v206, %v232
    %v234 = vlaneseq
    %v235 = vshrl.u32 %v234, 7
    %v236 = vsub.s32 0, %v235
    %v237 = vrot.slane %v210, %v236
    %v238 = vmul.f32 %v228, %v233
    %v239 = vmul.f32 %v228, %v237
    %v240 = vadd.f32 %v224, %v238
    %v241 = vadd.f32 %v225, %v239
    %242 = vset.pattern.permute.xlu0 8
    %243 = vperm.xlu0 %242, %v39
    %v244 = vpop.permute.xlu0 %243
    %v246 = vadd.f32 %v240, %v244
    %v247 = vadd.f32 %v241, %v244
    %248 = vset.pattern.permute.xlu0 1
    %249 = vperm.xlu0 %248, %v39
    %v250 = vpop.permute.xlu0 %249
    %v252 = vlaneseq
    %v253 = vshrl.u32 %v252, 7
    %v254 = vsub.s32 1, %v253
    %v255 = vrot.slane %v185, %v254
    %v256 = vlaneseq
    %v257 = vshrl.u32 %v256, 7
    %v258 = vsub.s32 1, %v257
    %v259 = vrot.slane %v186, %v258
    %v260 = vmul.f32 %v250, %v255
    %v261 = vmul.f32 %v250, %v259
    %v262 = vadd.f32 %v246, %v260
    %v263 = vadd.f32 %v247, %v261
    %264 = vset.pattern.permute.xlu0 5
    %265 = vperm.xlu0 %264, %v39
    %v266 = vpop.permute.xlu0 %265
    %v268 = vlaneseq
    %v269 = vshrl.u32 %v268, 7
    %v270 = vsub.s32 1, %v269
    %v271 = vrot.slane %v206, %v270
    %v272 = vlaneseq
    %v273 = vshrl.u32 %v272, 7
    %v274 = vsub.s32 1, %v273
    %v275 = vrot.slane %v210, %v274
    %v276 = vmul.f32 %v266, %v271
    %v277 = vmul.f32 %v266, %v275
    %v278 = vadd.f32 %v262, %v276
    %v279 = vadd.f32 %v263, %v277
    %280 = vset.pattern.permute.xlu0 2
    %281 = vperm.xlu0 %280, %v39
    %v282 = vpop.permute.xlu0 %281
    %v284 = vlaneseq
    %v285 = vshrl.u32 %v284, 7
    %v286 = vsub.s32 2, %v285
    %v287 = vrot.slane %v185, %v286
    %v288 = vlaneseq
    %v289 = vshrl.u32 %v288, 7
    %v290 = vsub.s32 2, %v289
    %v291 = vrot.slane %v186, %v290
    %v292 = vmul.f32 %v282, %v287
    %v293 = vmul.f32 %v282, %v291
    %v294 = vadd.f32 %v278, %v292
    %v295 = vadd.f32 %v279, %v293
    %296 = vset.pattern.permute.xlu0 6
    %297 = vperm.xlu0 %296, %v39
    %v298 = vpop.permute.xlu0 %297
    %v300 = vlaneseq
    %v301 = vshrl.u32 %v300, 7
    %v302 = vsub.s32 2, %v301
    %v303 = vrot.slane %v206, %v302
    %v304 = vlaneseq
    %v305 = vshrl.u32 %v304, 7
    %v306 = vsub.s32 2, %v305
    %v307 = vrot.slane %v210, %v306
    %v308 = vmul.f32 %v298, %v303
    %v309 = vmul.f32 %v298, %v307
    %v310 = vadd.f32 %v294, %v308
    %v311 = vadd.f32 %v295, %v309
    %312 = vset.pattern.permute.xlu0 3
    %313 = vperm.xlu0 %312, %v39
    %v314 = vpop.permute.xlu0 %313
    %v316 = vlaneseq
    %v317 = vshrl.u32 %v316, 7
    %v318 = vsub.s32 3, %v317
    %v319 = vrot.slane %v185, %v318
    %v320 = vlaneseq
    %v321 = vshrl.u32 %v320, 7
    %v322 = vsub.s32 3, %v321
    %v323 = vrot.slane %v186, %v322
    %v324 = vmul.f32 %v314, %v319
    %v325 = vmul.f32 %v314, %v323
    %v326 = vadd.f32 %v310, %v324
    %v327 = vadd.f32 %v311, %v325
    %328 = vset.pattern.permute.xlu0 7
    %329 = vperm.xlu0 %328, %v39
    %v330 = vpop.permute.xlu0 %329
    %v332 = vlaneseq
    %v333 = vshrl.u32 %v332, 7
    %v334 = vsub.s32 3, %v333
    %v335 = vrot.slane %v206, %v334
    %v336 = vlaneseq
    %v337 = vshrl.u32 %v336, 7
    %v338 = vsub.s32 3, %v337
    %v339 = vrot.slane %v210, %v338
    %v340 = vmul.f32 %v330, %v335
    %v341 = vmul.f32 %v330, %v339
    %v342 = vadd.f32 %v326, %v340
    %v343 = vadd.f32 %v327, %v341
    %v344 = vtanh.pop %v342
    %v345 = vtanh.pop %v343
    %v346 = vxor.u32 %v342, 2147483648
    %v347 = vxor.u32 %v343, 2147483648
    %v348 = vmul.f32 %v346, 1.442695
    %v349 = vpow.pop %v348
    %v350 = vmul.f32 %v347, 1.442695
    %v351 = vpow.pop %v350
    %v352 = vadd.f32 %v349, 1.0
    %v353 = vadd.f32 %v351, 1.0
    %v354 = vrcp.pop %v352
    %v355 = vmul.f32 1.0, %v354
    %v356 = vrcp.pop %v353
    %v357 = vmul.f32 1.0, %v356
    %v360 = vrot.slane %v355, 4
    %v361 = vrot.slane %v357, 4
    %v364 = vmul.f32 %v344, %v360
    %v365 = vmul.f32 %v345, %v361
    %366 = vset.pattern.permute.xlu0 9
    %367 = vperm.xlu0 %366, %v39
    %v368 = vpop.permute.xlu0 %367
    %v370 = vlaneseq
    %v371 = vshrl.u32 %v370, 7
    %v372 = vsub.s32 4, %v371
    %v373 = vrot.slane %v364, %v372
    %v374 = vlaneseq
    %v375 = vshrl.u32 %v374, 7
    %v376 = vsub.s32 4, %v375
    %v377 = vrot.slane %v365, %v376
    %v378 = vmul.f32 %v368, %v373
    %v379 = vmul.f32 %v368, %v377
    %380 = vset.pattern.permute.xlu0 13
    %381 = vperm.xlu0 %380, %v39
    %v382 = vpop.permute.xlu0 %381
    %v384 = vadd.f32 %v378, %v382
    %v385 = vadd.f32 %v379, %v382
    %386 = vset.pattern.permute.xlu0 10
    %387 = vperm.xlu0 %386, %v39
    %v388 = vpop.permute.xlu0 %387
    %v390 = vlaneseq
    %v391 = vshrl.u32 %v390, 7
    %v392 = vsub.s32 5, %v391
    %v393 = vrot.slane %v364, %v392
    %v394 = vlaneseq
    %v395 = vshrl.u32 %v394, 7
    %v396 = vsub.s32 5, %v395
    %v397 = vrot.slane %v365, %v396
    %v398 = vmul.f32 %v388, %v393
    %v399 = vmul.f32 %v388, %v397
    %v400 = vadd.f32 %v384, %v398
    %v401 = vadd.f32 %v385, %v399
    %402 = vset.pattern.permute.xlu0 11
    %403 = vperm.xlu0 %402, %v39
    %v404 = vpop.permute.xlu0 %403
    %v406 = vlaneseq
    %v407 = vshrl.u32 %v406, 7
    %v408 = vsub.s32 6, %v407
    %v409 = vrot.slane %v364, %v408
    %v410 = vlaneseq
    %v411 = vshrl.u32 %v410, 7
    %v412 = vsub.s32 6, %v411
    %v413 = vrot.slane %v365, %v412
    %v414 = vmul.f32 %v404, %v409
    %v415 = vmul.f32 %v404, %v413
    %v416 = vadd.f32 %v400, %v414
    %v417 = vadd.f32 %v401, %v415
    %418 = vset.pattern.permute.xlu0 12
    %419 = vperm.xlu0 %418, %v39
    %v420 = vpop.permute.xlu0 %419
    %v422 = vlaneseq
    %v423 = vshrl.u32 %v422, 7
    %v424 = vsub.s32 7, %v423
    %v425 = vrot.slane %v364, %v424
    %v426 = vlaneseq
    %v427 = vshrl.u32 %v426, 7
    %v428 = vsub.s32 7, %v427
    %v429 = vrot.slane %v365, %v428
    %v430 = vmul.f32 %v420, %v425
    %v431 = vmul.f32 %v420, %v429
    %v432 = vadd.f32 %v416, %v430
    %v433 = vadd.f32 %v417, %v431
    %v434 = vadd.f32 %v432, %v206
    %v435 = vadd.f32 %v433, %v210
    %438 = vrot.lane.b32.xlu0 %v432, 117
    %v439 = vpop.permute.xlu0 %438
    %440 = vrot.lane.b32.xlu0 %v433, 117
    %v441 = vpop.permute.xlu0 %440
    %vm442 = vcmask 957440
    %v443 = vsel %vm442, %v439, %v441
    %v447 = vsel %vm442, %v441, %v439
    %v448 = vadd.f32 %v194, %v443
    %v449 = vadd.f32 %v198, %v447
    %452 = vrot.lane.b32.xlu0 %v434, 124
    %v453 = vpop.permute.xlu0 %452
    %454 = vrot.lane.b32.xlu0 %v435, 124
    %v455 = vpop.permute.xlu0 %454
    %vm456 = vcmask 1014784
    %v457 = vsel %vm456, %v453, %v455
    %v461 = vsel %vm456, %v455, %v453
    %463 = vset.pattern.permute.xlu0 0
    %464 = vperm.xlu0 %463, %v40
    %v465 = vpop.permute.xlu0 %464
    %v467 = vlaneseq
    %v468 = vshrl.u32 %v467, 7
    %v469 = vsub.s32 0, %v468
    %v470 = vrot.slane %v434, %v469
    %v471 = vlaneseq
    %v472 = vshrl.u32 %v471, 7
    %v473 = vsub.s32 0, %v472
    %v474 = vrot.slane %v435, %v473
    %v475 = vmul.f32 %v465, %v470
    %v476 = vmul.f32 %v465, %v474
    %477 = vset.pattern.permute.xlu0 4
    %478 = vperm.xlu0 %477, %v40
    %v479 = vpop.permute.xlu0 %478
    %v481 = vlaneseq
    %v482 = vshrl.u32 %v481, 7
    %v483 = vsub.s32 0, %v482
    %v484 = vrot.slane %v457, %v483
    %v485 = vlaneseq
    %v486 = vshrl.u32 %v485, 7
    %v487 = vsub.s32 0, %v486
    %v488 = vrot.slane %v461, %v487
    %v489 = vmul.f32 %v479, %v484
    %v490 = vmul.f32 %v479, %v488
    %v491 = vadd.f32 %v475, %v489
    %v492 = vadd.f32 %v476, %v490
    %493 = vset.pattern.permute.xlu0 8
    %494 = vperm.xlu0 %493, %v40
    %v495 = vpop.permute.xlu0 %494
    %v497 = vadd.f32 %v491, %v495
    %v498 = vadd.f32 %v492, %v495
    %499 = vset.pattern.permute.xlu0 1
    %500 = vperm.xlu0 %499, %v40
    %v501 = vpop.permute.xlu0 %500
    %v503 = vlaneseq
    %v504 = vshrl.u32 %v503, 7
    %v505 = vsub.s32 1, %v504
    %v506 = vrot.slane %v434, %v505
    %v507 = vlaneseq
    %v508 = vshrl.u32 %v507, 7
    %v509 = vsub.s32 1, %v508
    %v510 = vrot.slane %v435, %v509
    %v511 = vmul.f32 %v501, %v506
    %v512 = vmul.f32 %v501, %v510
    %v513 = vadd.f32 %v497, %v511
    %v514 = vadd.f32 %v498, %v512
    %515 = vset.pattern.permute.xlu0 5
    %516 = vperm.xlu0 %515, %v40
    %v517 = vpop.permute.xlu0 %516
    %v519 = vlaneseq
    %v520 = vshrl.u32 %v519, 7
    %v521 = vsub.s32 1, %v520
    %v522 = vrot.slane %v457, %v521
    %v523 = vlaneseq
    %v524 = vshrl.u32 %v523, 7
    %v525 = vsub.s32 1, %v524
    %v526 = vrot.slane %v461, %v525
    %v527 = vmul.f32 %v517, %v522
    %v528 = vmul.f32 %v517, %v526
    %v529 = vadd.f32 %v513, %v527
    %v530 = vadd.f32 %v514, %v528
    %531 = vset.pattern.permute.xlu0 2
    %532 = vperm.xlu0 %531, %v40
    %v533 = vpop.permute.xlu0 %532
    %v535 = vlaneseq
    %v536 = vshrl.u32 %v535, 7
    %v537 = vsub.s32 2, %v536
    %v538 = vrot.slane %v434, %v537
    %v539 = vlaneseq
    %v540 = vshrl.u32 %v539, 7
    %v541 = vsub.s32 2, %v540
    %v542 = vrot.slane %v435, %v541
    %v543 = vmul.f32 %v533, %v538
    %v544 = vmul.f32 %v533, %v542
    %v545 = vadd.f32 %v529, %v543
    %v546 = vadd.f32 %v530, %v544
    %547 = vset.pattern.permute.xlu0 6
    %548 = vperm.xlu0 %547, %v40
    %v549 = vpop.permute.xlu0 %548
    %v551 = vlaneseq
    %v552 = vshrl.u32 %v551, 7
    %v553 = vsub.s32 2, %v552
    %v554 = vrot.slane %v457, %v553
    %v555 = vlaneseq
    %v556 = vshrl.u32 %v555, 7
    %v557 = vsub.s32 2, %v556
    %v558 = vrot.slane %v461, %v557
    %v559 = vmul.f32 %v549, %v554
    %v560 = vmul.f32 %v549, %v558
    %v561 = vadd.f32 %v545, %v559
    %v562 = vadd.f32 %v546, %v560
    %563 = vset.pattern.permute.xlu0 3
    %564 = vperm.xlu0 %563, %v40
    %v565 = vpop.permute.xlu0 %564
    %v567 = vlaneseq
    %v568 = vshrl.u32 %v567, 7
    %v569 = vsub.s32 3, %v568
    %v570 = vrot.slane %v434, %v569
    %v571 = vlaneseq
    %v572 = vshrl.u32 %v571, 7
    %v573 = vsub.s32 3, %v572
    %v574 = vrot.slane %v435, %v573
    %v575 = vmul.f32 %v565, %v570
    %v576 = vmul.f32 %v565, %v574
    %v577 = vadd.f32 %v561, %v575
    %v578 = vadd.f32 %v562, %v576
    %579 = vset.pattern.permute.xlu0 7
    %580 = vperm.xlu0 %579, %v40
    %v581 = vpop.permute.xlu0 %580
    %v583 = vlaneseq
    %v584 = vshrl.u32 %v583, 7
    %v585 = vsub.s32 3, %v584
    %v586 = vrot.slane %v457, %v585
    %v587 = vlaneseq
    %v588 = vshrl.u32 %v587, 7
    %v589 = vsub.s32 3, %v588
    %v590 = vrot.slane %v461, %v589
    %v591 = vmul.f32 %v581, %v586
    %v592 = vmul.f32 %v581, %v590
    %v593 = vadd.f32 %v577, %v591
    %v594 = vadd.f32 %v578, %v592
    %v595 = vtanh.pop %v593
    %v596 = vtanh.pop %v594
    %v597 = vxor.u32 %v593, 2147483648
    %v598 = vxor.u32 %v594, 2147483648
    %v599 = vmul.f32 %v597, 1.442695
    %v600 = vpow.pop %v599
    %v601 = vmul.f32 %v598, 1.442695
    %v602 = vpow.pop %v601
    %v603 = vadd.f32 %v600, 1.0
    %v604 = vadd.f32 %v602, 1.0
    %v605 = vrcp.pop %v603
    %v606 = vmul.f32 1.0, %v605
    %v607 = vrcp.pop %v604
    %v608 = vmul.f32 1.0, %v607
    %v611 = vrot.slane %v606, 4
    %v612 = vrot.slane %v608, 4
    %v615 = vmul.f32 %v595, %v611
    %v616 = vmul.f32 %v596, %v612
    %617 = vset.pattern.permute.xlu0 9
    %618 = vperm.xlu0 %617, %v40
    %v619 = vpop.permute.xlu0 %618
    %v621 = vlaneseq
    %v622 = vshrl.u32 %v621, 7
    %v623 = vsub.s32 4, %v622
    %v624 = vrot.slane %v615, %v623
    %v625 = vlaneseq
    %v626 = vshrl.u32 %v625, 7
    %v627 = vsub.s32 4, %v626
    %v628 = vrot.slane %v616, %v627
    %v629 = vmul.f32 %v619, %v624
    %v630 = vmul.f32 %v619, %v628
    %631 = vset.pattern.permute.xlu0 13
    %632 = vperm.xlu0 %631, %v40
    %v633 = vpop.permute.xlu0 %632
    %v635 = vadd.f32 %v629, %v633
    %v636 = vadd.f32 %v630, %v633
    %637 = vset.pattern.permute.xlu0 10
    %638 = vperm.xlu0 %637, %v40
    %v639 = vpop.permute.xlu0 %638
    %v641 = vlaneseq
    %v642 = vshrl.u32 %v641, 7
    %v643 = vsub.s32 5, %v642
    %v644 = vrot.slane %v615, %v643
    %v645 = vlaneseq
    %v646 = vshrl.u32 %v645, 7
    %v647 = vsub.s32 5, %v646
    %v648 = vrot.slane %v616, %v647
    %v649 = vmul.f32 %v639, %v644
    %v650 = vmul.f32 %v639, %v648
    %v651 = vadd.f32 %v635, %v649
    %v652 = vadd.f32 %v636, %v650
    %653 = vset.pattern.permute.xlu0 11
    %654 = vperm.xlu0 %653, %v40
    %v655 = vpop.permute.xlu0 %654
    %v657 = vlaneseq
    %v658 = vshrl.u32 %v657, 7
    %v659 = vsub.s32 6, %v658
    %v660 = vrot.slane %v615, %v659
    %v661 = vlaneseq
    %v662 = vshrl.u32 %v661, 7
    %v663 = vsub.s32 6, %v662
    %v664 = vrot.slane %v616, %v663
    %v665 = vmul.f32 %v655, %v660
    %v666 = vmul.f32 %v655, %v664
    %v667 = vadd.f32 %v651, %v665
    %v668 = vadd.f32 %v652, %v666
    %669 = vset.pattern.permute.xlu0 12
    %670 = vperm.xlu0 %669, %v40
    %v671 = vpop.permute.xlu0 %670
    %v673 = vlaneseq
    %v674 = vshrl.u32 %v673, 7
    %v675 = vsub.s32 7, %v674
    %v676 = vrot.slane %v615, %v675
    %v677 = vlaneseq
    %v678 = vshrl.u32 %v677, 7
    %v679 = vsub.s32 7, %v678
    %v680 = vrot.slane %v616, %v679
    %v681 = vmul.f32 %v671, %v676
    %v682 = vmul.f32 %v671, %v680
    %v683 = vadd.f32 %v667, %v681
    %v684 = vadd.f32 %v668, %v682
    %v685 = vadd.f32 %v683, %v457
    %v686 = vadd.f32 %v684, %v461
    %689 = vrot.lane.b32.xlu0 %v683, 121
    %v690 = vpop.permute.xlu0 %689
    %691 = vrot.lane.b32.xlu0 %v684, 121
    %v692 = vpop.permute.xlu0 %691
    %vm693 = vcmask 990208
    %v694 = vsel %vm693, %v690, %v692
    %v698 = vsel %vm693, %v692, %v690
    %v699 = vadd.f32 %v448, %v694
    %v700 = vadd.f32 %v449, %v698
    %703 = vrot.lane.b32.xlu0 %v685, 127
    %v704 = vpop.permute.xlu0 %703
    %705 = vrot.lane.b32.xlu0 %v686, 127
    %v706 = vpop.permute.xlu0 %705
    %v707 = vsel %vm58, %v704, %v706
    %v711 = vsel %vm58, %v706, %v704
    %713 = vset.pattern.permute.xlu0 0
    %714 = vperm.xlu0 %713, %v41
    %v715 = vpop.permute.xlu0 %714
    %v717 = vlaneseq
    %v718 = vshrl.u32 %v717, 7
    %v719 = vsub.s32 0, %v718
    %v720 = vrot.slane %v685, %v719
    %v721 = vlaneseq
    %v722 = vshrl.u32 %v721, 7
    %v723 = vsub.s32 0, %v722
    %v724 = vrot.slane %v686, %v723
    %v725 = vmul.f32 %v715, %v720
    %v726 = vmul.f32 %v715, %v724
    %727 = vset.pattern.permute.xlu0 4
    %728 = vperm.xlu0 %727, %v41
    %v729 = vpop.permute.xlu0 %728
    %v731 = vlaneseq
    %v732 = vshrl.u32 %v731, 7
    %v733 = vsub.s32 0, %v732
    %v734 = vrot.slane %v707, %v733
    %v735 = vlaneseq
    %v736 = vshrl.u32 %v735, 7
    %v737 = vsub.s32 0, %v736
    %v738 = vrot.slane %v711, %v737
    %v739 = vmul.f32 %v729, %v734
    %v740 = vmul.f32 %v729, %v738
    %v741 = vadd.f32 %v725, %v739
    %v742 = vadd.f32 %v726, %v740
    %743 = vset.pattern.permute.xlu0 8
    %744 = vperm.xlu0 %743, %v41
    %v745 = vpop.permute.xlu0 %744
    %v747 = vadd.f32 %v741, %v745
    %v748 = vadd.f32 %v742, %v745
    %749 = vset.pattern.permute.xlu0 1
    %750 = vperm.xlu0 %749, %v41
    %v751 = vpop.permute.xlu0 %750
    %v753 = vlaneseq
    %v754 = vshrl.u32 %v753, 7
    %v755 = vsub.s32 1, %v754
    %v756 = vrot.slane %v685, %v755
    %v757 = vlaneseq
    %v758 = vshrl.u32 %v757, 7
    %v759 = vsub.s32 1, %v758
    %v760 = vrot.slane %v686, %v759
    %v761 = vmul.f32 %v751, %v756
    %v762 = vmul.f32 %v751, %v760
    %v763 = vadd.f32 %v747, %v761
    %v764 = vadd.f32 %v748, %v762
    %765 = vset.pattern.permute.xlu0 5
    %766 = vperm.xlu0 %765, %v41
    %v767 = vpop.permute.xlu0 %766
    %v769 = vlaneseq
    %v770 = vshrl.u32 %v769, 7
    %v771 = vsub.s32 1, %v770
    %v772 = vrot.slane %v707, %v771
    %v773 = vlaneseq
    %v774 = vshrl.u32 %v773, 7
    %v775 = vsub.s32 1, %v774
    %v776 = vrot.slane %v711, %v775
    %v777 = vmul.f32 %v767, %v772
    %v778 = vmul.f32 %v767, %v776
    %v779 = vadd.f32 %v763, %v777
    %v780 = vadd.f32 %v764, %v778
    %781 = vset.pattern.permute.xlu0 2
    %782 = vperm.xlu0 %781, %v41
    %v783 = vpop.permute.xlu0 %782
    %v785 = vlaneseq
    %v786 = vshrl.u32 %v785, 7
    %v787 = vsub.s32 2, %v786
    %v788 = vrot.slane %v685, %v787
    %v789 = vlaneseq
    %v790 = vshrl.u32 %v789, 7
    %v791 = vsub.s32 2, %v790
    %v792 = vrot.slane %v686, %v791
    %v793 = vmul.f32 %v783, %v788
    %v794 = vmul.f32 %v783, %v792
    %v795 = vadd.f32 %v779, %v793
    %v796 = vadd.f32 %v780, %v794
    %797 = vset.pattern.permute.xlu0 6
    %798 = vperm.xlu0 %797, %v41
    %v799 = vpop.permute.xlu0 %798
    %v801 = vlaneseq
    %v802 = vshrl.u32 %v801, 7
    %v803 = vsub.s32 2, %v802
    %v804 = vrot.slane %v707, %v803
    %v805 = vlaneseq
    %v806 = vshrl.u32 %v805, 7
    %v807 = vsub.s32 2, %v806
    %v808 = vrot.slane %v711, %v807
    %v809 = vmul.f32 %v799, %v804
    %v810 = vmul.f32 %v799, %v808
    %v811 = vadd.f32 %v795, %v809
    %v812 = vadd.f32 %v796, %v810
    %813 = vset.pattern.permute.xlu0 3
    %814 = vperm.xlu0 %813, %v41
    %v815 = vpop.permute.xlu0 %814
    %v817 = vlaneseq
    %v818 = vshrl.u32 %v817, 7
    %v819 = vsub.s32 3, %v818
    %v820 = vrot.slane %v685, %v819
    %v821 = vlaneseq
    %v822 = vshrl.u32 %v821, 7
    %v823 = vsub.s32 3, %v822
    %v824 = vrot.slane %v686, %v823
    %v825 = vmul.f32 %v815, %v820
    %v826 = vmul.f32 %v815, %v824
    %v827 = vadd.f32 %v811, %v825
    %v828 = vadd.f32 %v812, %v826
    %829 = vset.pattern.permute.xlu0 7
    %830 = vperm.xlu0 %829, %v41
    %v831 = vpop.permute.xlu0 %830
    %v833 = vlaneseq
    %v834 = vshrl.u32 %v833, 7
    %v835 = vsub.s32 3, %v834
    %v836 = vrot.slane %v707, %v835
    %v837 = vlaneseq
    %v838 = vshrl.u32 %v837, 7
    %v839 = vsub.s32 3, %v838
    %v840 = vrot.slane %v711, %v839
    %v841 = vmul.f32 %v831, %v836
    %v842 = vmul.f32 %v831, %v840
    %v843 = vadd.f32 %v827, %v841
    %v844 = vadd.f32 %v828, %v842
    %v845 = vtanh.pop %v843
    %v846 = vtanh.pop %v844
    %v847 = vxor.u32 %v843, 2147483648
    %v848 = vxor.u32 %v844, 2147483648
    %v849 = vmul.f32 %v847, 1.442695
    %v850 = vpow.pop %v849
    %v851 = vmul.f32 %v848, 1.442695
    %v852 = vpow.pop %v851
    %v853 = vadd.f32 %v850, 1.0
    %v854 = vadd.f32 %v852, 1.0
    %v855 = vrcp.pop %v853
    %v856 = vmul.f32 1.0, %v855
    %v857 = vrcp.pop %v854
    %v858 = vmul.f32 1.0, %v857
    %v861 = vrot.slane %v856, 4
    %v862 = vrot.slane %v858, 4
    %v865 = vmul.f32 %v845, %v861
    %v866 = vmul.f32 %v846, %v862
    %867 = vset.pattern.permute.xlu0 9
    %868 = vperm.xlu0 %867, %v41
    %v869 = vpop.permute.xlu0 %868
    %v871 = vlaneseq
    %v872 = vshrl.u32 %v871, 7
    %v873 = vsub.s32 4, %v872
    %v874 = vrot.slane %v865, %v873
    %v875 = vlaneseq
    %v876 = vshrl.u32 %v875, 7
    %v877 = vsub.s32 4, %v876
    %v878 = vrot.slane %v866, %v877
    %v879 = vmul.f32 %v869, %v874
    %v880 = vmul.f32 %v869, %v878
    %881 = vset.pattern.permute.xlu0 13
    %882 = vperm.xlu0 %881, %v41
    %v883 = vpop.permute.xlu0 %882
    %v885 = vadd.f32 %v879, %v883
    %v886 = vadd.f32 %v880, %v883
    %887 = vset.pattern.permute.xlu0 10
    %888 = vperm.xlu0 %887, %v41
    %v889 = vpop.permute.xlu0 %888
    %v891 = vlaneseq
    %v892 = vshrl.u32 %v891, 7
    %v893 = vsub.s32 5, %v892
    %v894 = vrot.slane %v865, %v893
    %v895 = vlaneseq
    %v896 = vshrl.u32 %v895, 7
    %v897 = vsub.s32 5, %v896
    %v898 = vrot.slane %v866, %v897
    %v899 = vmul.f32 %v889, %v894
    %v900 = vmul.f32 %v889, %v898
    %v901 = vadd.f32 %v885, %v899
    %v902 = vadd.f32 %v886, %v900
    %903 = vset.pattern.permute.xlu0 11
    %904 = vperm.xlu0 %903, %v41
    %v905 = vpop.permute.xlu0 %904
    %v907 = vlaneseq
    %v908 = vshrl.u32 %v907, 7
    %v909 = vsub.s32 6, %v908
    %v910 = vrot.slane %v865, %v909
    %v911 = vlaneseq
    %v912 = vshrl.u32 %v911, 7
    %v913 = vsub.s32 6, %v912
    %v914 = vrot.slane %v866, %v913
    %v915 = vmul.f32 %v905, %v910
    %v916 = vmul.f32 %v905, %v914
    %v917 = vadd.f32 %v901, %v915
    %v918 = vadd.f32 %v902, %v916
    %919 = vset.pattern.permute.xlu0 12
    %920 = vperm.xlu0 %919, %v41
    %v921 = vpop.permute.xlu0 %920
    %v923 = vlaneseq
    %v924 = vshrl.u32 %v923, 7
    %v925 = vsub.s32 7, %v924
    %v926 = vrot.slane %v865, %v925
    %v927 = vlaneseq
    %v928 = vshrl.u32 %v927, 7
    %v929 = vsub.s32 7, %v928
    %v930 = vrot.slane %v866, %v929
    %v931 = vmul.f32 %v921, %v926
    %v932 = vmul.f32 %v921, %v930
    %v933 = vadd.f32 %v917, %v931
    %v934 = vadd.f32 %v918, %v932
    %v935 = vadd.f32 %v933, %v707
    %v936 = vadd.f32 %v934, %v711
    %939 = vrot.lane.b32.xlu0 %v933, 122
    %v940 = vpop.permute.xlu0 %939
    %941 = vrot.lane.b32.xlu0 %v934, 122
    %v942 = vpop.permute.xlu0 %941
    %vm943 = vcmask 998400
    %v944 = vsel %vm943, %v940, %v942
    %v948 = vsel %vm943, %v942, %v940
    %v949 = vadd.f32 %v699, %v944
    %v950 = vadd.f32 %v700, %v948
    %953 = vrot.lane.b32.xlu0 %v935, 126
    %v954 = vpop.permute.xlu0 %953
    %955 = vrot.lane.b32.xlu0 %v936, 126
    %v956 = vpop.permute.xlu0 %955
    %v957 = vsel %vm205, %v954, %v956
    %v961 = vsel %vm205, %v956, %v954
    %963 = vset.pattern.permute.xlu0 0
    %964 = vperm.xlu0 %963, %v42
    %v965 = vpop.permute.xlu0 %964
    %v967 = vlaneseq
    %v968 = vshrl.u32 %v967, 7
    %v969 = vsub.s32 0, %v968
    %v970 = vrot.slane %v935, %v969
    %v971 = vlaneseq
    %v972 = vshrl.u32 %v971, 7
    %v973 = vsub.s32 0, %v972
    %v974 = vrot.slane %v936, %v973
    %v975 = vmul.f32 %v965, %v970
    %v976 = vmul.f32 %v965, %v974
    %977 = vset.pattern.permute.xlu0 4
    %978 = vperm.xlu0 %977, %v42
    %v979 = vpop.permute.xlu0 %978
    %v981 = vlaneseq
    %v982 = vshrl.u32 %v981, 7
    %v983 = vsub.s32 0, %v982
    %v984 = vrot.slane %v957, %v983
    %v985 = vlaneseq
    %v986 = vshrl.u32 %v985, 7
    %v987 = vsub.s32 0, %v986
    %v988 = vrot.slane %v961, %v987
    %v989 = vmul.f32 %v979, %v984
    %v990 = vmul.f32 %v979, %v988
    %v991 = vadd.f32 %v975, %v989
    %v992 = vadd.f32 %v976, %v990
    %993 = vset.pattern.permute.xlu0 8
    %994 = vperm.xlu0 %993, %v42
    %v995 = vpop.permute.xlu0 %994
    %v997 = vadd.f32 %v991, %v995
    %v998 = vadd.f32 %v992, %v995
    %999 = vset.pattern.permute.xlu0 1
    %1000 = vperm.xlu0 %999, %v42
    %v1001 = vpop.permute.xlu0 %1000
    %v1003 = vlaneseq
    %v1004 = vshrl.u32 %v1003, 7
    %v1005 = vsub.s32 1, %v1004
    %v1006 = vrot.slane %v935, %v1005
    %v1007 = vlaneseq
    %v1008 = vshrl.u32 %v1007, 7
    %v1009 = vsub.s32 1, %v1008
    %v1010 = vrot.slane %v936, %v1009
    %v1011 = vmul.f32 %v1001, %v1006
    %v1012 = vmul.f32 %v1001, %v1010
    %v1013 = vadd.f32 %v997, %v1011
    %v1014 = vadd.f32 %v998, %v1012
    %1015 = vset.pattern.permute.xlu0 5
    %1016 = vperm.xlu0 %1015, %v42
    %v1017 = vpop.permute.xlu0 %1016
    %v1019 = vlaneseq
    %v1020 = vshrl.u32 %v1019, 7
    %v1021 = vsub.s32 1, %v1020
    %v1022 = vrot.slane %v957, %v1021
    %v1023 = vlaneseq
    %v1024 = vshrl.u32 %v1023, 7
    %v1025 = vsub.s32 1, %v1024
    %v1026 = vrot.slane %v961, %v1025
    %v1027 = vmul.f32 %v1017, %v1022
    %v1028 = vmul.f32 %v1017, %v1026
    %v1029 = vadd.f32 %v1013, %v1027
    %v1030 = vadd.f32 %v1014, %v1028
    %1031 = vset.pattern.permute.xlu0 2
    %1032 = vperm.xlu0 %1031, %v42
    %v1033 = vpop.permute.xlu0 %1032
    %v1035 = vlaneseq
    %v1036 = vshrl.u32 %v1035, 7
    %v1037 = vsub.s32 2, %v1036
    %v1038 = vrot.slane %v935, %v1037
    %v1039 = vlaneseq
    %v1040 = vshrl.u32 %v1039, 7
    %v1041 = vsub.s32 2, %v1040
    %v1042 = vrot.slane %v936, %v1041
    %v1043 = vmul.f32 %v1033, %v1038
    %v1044 = vmul.f32 %v1033, %v1042
    %v1045 = vadd.f32 %v1029, %v1043
    %v1046 = vadd.f32 %v1030, %v1044
    %1047 = vset.pattern.permute.xlu0 6
    %1048 = vperm.xlu0 %1047, %v42
    %v1049 = vpop.permute.xlu0 %1048
    %v1051 = vlaneseq
    %v1052 = vshrl.u32 %v1051, 7
    %v1053 = vsub.s32 2, %v1052
    %v1054 = vrot.slane %v957, %v1053
    %v1055 = vlaneseq
    %v1056 = vshrl.u32 %v1055, 7
    %v1057 = vsub.s32 2, %v1056
    %v1058 = vrot.slane %v961, %v1057
    %v1059 = vmul.f32 %v1049, %v1054
    %v1060 = vmul.f32 %v1049, %v1058
    %v1061 = vadd.f32 %v1045, %v1059
    %v1062 = vadd.f32 %v1046, %v1060
    %1063 = vset.pattern.permute.xlu0 3
    %1064 = vperm.xlu0 %1063, %v42
    %v1065 = vpop.permute.xlu0 %1064
    %v1067 = vlaneseq
    %v1068 = vshrl.u32 %v1067, 7
    %v1069 = vsub.s32 3, %v1068
    %v1070 = vrot.slane %v935, %v1069
    %v1071 = vlaneseq
    %v1072 = vshrl.u32 %v1071, 7
    %v1073 = vsub.s32 3, %v1072
    %v1074 = vrot.slane %v936, %v1073
    %v1075 = vmul.f32 %v1065, %v1070
    %v1076 = vmul.f32 %v1065, %v1074
    %v1077 = vadd.f32 %v1061, %v1075
    %v1078 = vadd.f32 %v1062, %v1076
    %1079 = vset.pattern.permute.xlu0 7
    %1080 = vperm.xlu0 %1079, %v42
    %v1081 = vpop.permute.xlu0 %1080
    %v1083 = vlaneseq
    %v1084 = vshrl.u32 %v1083, 7
    %v1085 = vsub.s32 3, %v1084
    %v1086 = vrot.slane %v957, %v1085
    %v1087 = vlaneseq
    %v1088 = vshrl.u32 %v1087, 7
    %v1089 = vsub.s32 3, %v1088
    %v1090 = vrot.slane %v961, %v1089
    %v1091 = vmul.f32 %v1081, %v1086
    %v1092 = vmul.f32 %v1081, %v1090
    %v1093 = vadd.f32 %v1077, %v1091
    %v1094 = vadd.f32 %v1078, %v1092
    %v1095 = vtanh.pop %v1093
    %v1096 = vtanh.pop %v1094
    %v1097 = vxor.u32 %v1093, 2147483648
    %v1098 = vxor.u32 %v1094, 2147483648
    %v1099 = vmul.f32 %v1097, 1.442695
    %v1100 = vpow.pop %v1099
    %v1101 = vmul.f32 %v1098, 1.442695
    %v1102 = vpow.pop %v1101
    %v1103 = vadd.f32 %v1100, 1.0
    %v1104 = vadd.f32 %v1102, 1.0
    %v1105 = vrcp.pop %v1103
    %v1106 = vmul.f32 1.0, %v1105
    %v1107 = vrcp.pop %v1104
    %v1108 = vmul.f32 1.0, %v1107
    %v1111 = vrot.slane %v1106, 4
    %v1112 = vrot.slane %v1108, 4
    %v1115 = vmul.f32 %v1095, %v1111
    %v1116 = vmul.f32 %v1096, %v1112
    %1117 = vset.pattern.permute.xlu0 9
    %1118 = vperm.xlu0 %1117, %v42
    %v1119 = vpop.permute.xlu0 %1118
    %v1121 = vlaneseq
    %v1122 = vshrl.u32 %v1121, 7
    %v1123 = vsub.s32 4, %v1122
    %v1124 = vrot.slane %v1115, %v1123
    %v1125 = vlaneseq
    %v1126 = vshrl.u32 %v1125, 7
    %v1127 = vsub.s32 4, %v1126
    %v1128 = vrot.slane %v1116, %v1127
    %v1129 = vmul.f32 %v1119, %v1124
    %v1130 = vmul.f32 %v1119, %v1128
    %1131 = vset.pattern.permute.xlu0 13
    %1132 = vperm.xlu0 %1131, %v42
    %v1133 = vpop.permute.xlu0 %1132
    %v1135 = vadd.f32 %v1129, %v1133
    %v1136 = vadd.f32 %v1130, %v1133
    %1137 = vset.pattern.permute.xlu0 10
    %1138 = vperm.xlu0 %1137, %v42
    %v1139 = vpop.permute.xlu0 %1138
    %v1141 = vlaneseq
    %v1142 = vshrl.u32 %v1141, 7
    %v1143 = vsub.s32 5, %v1142
    %v1144 = vrot.slane %v1115, %v1143
    %v1145 = vlaneseq
    %v1146 = vshrl.u32 %v1145, 7
    %v1147 = vsub.s32 5, %v1146
    %v1148 = vrot.slane %v1116, %v1147
    %v1149 = vmul.f32 %v1139, %v1144
    %v1150 = vmul.f32 %v1139, %v1148
    %v1151 = vadd.f32 %v1135, %v1149
    %v1152 = vadd.f32 %v1136, %v1150
    %1153 = vset.pattern.permute.xlu0 11
    %1154 = vperm.xlu0 %1153, %v42
    %v1155 = vpop.permute.xlu0 %1154
    %v1157 = vlaneseq
    %v1158 = vshrl.u32 %v1157, 7
    %v1159 = vsub.s32 6, %v1158
    %v1160 = vrot.slane %v1115, %v1159
    %v1161 = vlaneseq
    %v1162 = vshrl.u32 %v1161, 7
    %v1163 = vsub.s32 6, %v1162
    %v1164 = vrot.slane %v1116, %v1163
    %v1165 = vmul.f32 %v1155, %v1160
    %v1166 = vmul.f32 %v1155, %v1164
    %v1167 = vadd.f32 %v1151, %v1165
    %v1168 = vadd.f32 %v1152, %v1166
    %1169 = vset.pattern.permute.xlu0 12
    %1170 = vperm.xlu0 %1169, %v42
    %v1171 = vpop.permute.xlu0 %1170
    %v1173 = vlaneseq
    %v1174 = vshrl.u32 %v1173, 7
    %v1175 = vsub.s32 7, %v1174
    %v1176 = vrot.slane %v1115, %v1175
    %v1177 = vlaneseq
    %v1178 = vshrl.u32 %v1177, 7
    %v1179 = vsub.s32 7, %v1178
    %v1180 = vrot.slane %v1116, %v1179
    %v1181 = vmul.f32 %v1171, %v1176
    %v1182 = vmul.f32 %v1171, %v1180
    %v1183 = vadd.f32 %v1167, %v1181
    %v1184 = vadd.f32 %v1168, %v1182
    %v1185 = vadd.f32 %v1183, %v957
    %v1186 = vadd.f32 %v1184, %v961
    %1189 = vrot.lane.b32.xlu0 %v1183, 124
    %v1190 = vpop.permute.xlu0 %1189
    %1191 = vrot.lane.b32.xlu0 %v1184, 124
    %v1192 = vpop.permute.xlu0 %1191
    %v1193 = vsel %vm456, %v1190, %v1192
    %v1197 = vsel %vm456, %v1192, %v1190
    %v1198 = vadd.f32 %v949, %v1193
    %v1199 = vadd.f32 %v950, %v1197
    %1202 = vrot.lane.b32.xlu0 %v1185, 124
    %v1203 = vpop.permute.xlu0 %1202
    %1204 = vrot.lane.b32.xlu0 %v1186, 124
    %v1205 = vpop.permute.xlu0 %1204
    %v1206 = vsel %vm456, %v1203, %v1205
    %v1210 = vsel %vm456, %v1205, %v1203
    %1212 = vset.pattern.permute.xlu0 0
    %1213 = vperm.xlu0 %1212, %v43
    %v1214 = vpop.permute.xlu0 %1213
    %v1216 = vlaneseq
    %v1217 = vshrl.u32 %v1216, 7
    %v1218 = vsub.s32 0, %v1217
    %v1219 = vrot.slane %v1185, %v1218
    %v1220 = vlaneseq
    %v1221 = vshrl.u32 %v1220, 7
    %v1222 = vsub.s32 0, %v1221
    %v1223 = vrot.slane %v1186, %v1222
    %v1224 = vmul.f32 %v1214, %v1219
    %v1225 = vmul.f32 %v1214, %v1223
    %1226 = vset.pattern.permute.xlu0 4
    %1227 = vperm.xlu0 %1226, %v43
    %v1228 = vpop.permute.xlu0 %1227
    %v1230 = vlaneseq
    %v1231 = vshrl.u32 %v1230, 7
    %v1232 = vsub.s32 0, %v1231
    %v1233 = vrot.slane %v1206, %v1232
    %v1234 = vlaneseq
    %v1235 = vshrl.u32 %v1234, 7
    %v1236 = vsub.s32 0, %v1235
    %v1237 = vrot.slane %v1210, %v1236
    %v1238 = vmul.f32 %v1228, %v1233
    %v1239 = vmul.f32 %v1228, %v1237
    %v1240 = vadd.f32 %v1224, %v1238
    %v1241 = vadd.f32 %v1225, %v1239
    %1242 = vset.pattern.permute.xlu0 8
    %1243 = vperm.xlu0 %1242, %v43
    %v1244 = vpop.permute.xlu0 %1243
    %v1246 = vadd.f32 %v1240, %v1244
    %v1247 = vadd.f32 %v1241, %v1244
    %1248 = vset.pattern.permute.xlu0 1
    %1249 = vperm.xlu0 %1248, %v43
    %v1250 = vpop.permute.xlu0 %1249
    %v1252 = vlaneseq
    %v1253 = vshrl.u32 %v1252, 7
    %v1254 = vsub.s32 1, %v1253
    %v1255 = vrot.slane %v1185, %v1254
    %v1256 = vlaneseq
    %v1257 = vshrl.u32 %v1256, 7
    %v1258 = vsub.s32 1, %v1257
    %v1259 = vrot.slane %v1186, %v1258
    %v1260 = vmul.f32 %v1250, %v1255
    %v1261 = vmul.f32 %v1250, %v1259
    %v1262 = vadd.f32 %v1246, %v1260
    %v1263 = vadd.f32 %v1247, %v1261
    %1264 = vset.pattern.permute.xlu0 5
    %1265 = vperm.xlu0 %1264, %v43
    %v1266 = vpop.permute.xlu0 %1265
    %v1268 = vlaneseq
    %v1269 = vshrl.u32 %v1268, 7
    %v1270 = vsub.s32 1, %v1269
    %v1271 = vrot.slane %v1206, %v1270
    %v1272 = vlaneseq
    %v1273 = vshrl.u32 %v1272, 7
    %v1274 = vsub.s32 1, %v1273
    %v1275 = vrot.slane %v1210, %v1274
    %v1276 = vmul.f32 %v1266, %v1271
    %v1277 = vmul.f32 %v1266, %v1275
    %v1278 = vadd.f32 %v1262, %v1276
    %v1279 = vadd.f32 %v1263, %v1277
    %1280 = vset.pattern.permute.xlu0 2
    %1281 = vperm.xlu0 %1280, %v43
    %v1282 = vpop.permute.xlu0 %1281
    %v1284 = vlaneseq
    %v1285 = vshrl.u32 %v1284, 7
    %v1286 = vsub.s32 2, %v1285
    %v1287 = vrot.slane %v1185, %v1286
    %v1288 = vlaneseq
    %v1289 = vshrl.u32 %v1288, 7
    %v1290 = vsub.s32 2, %v1289
    %v1291 = vrot.slane %v1186, %v1290
    %v1292 = vmul.f32 %v1282, %v1287
    %v1293 = vmul.f32 %v1282, %v1291
    %v1294 = vadd.f32 %v1278, %v1292
    %v1295 = vadd.f32 %v1279, %v1293
    %1296 = vset.pattern.permute.xlu0 6
    %1297 = vperm.xlu0 %1296, %v43
    %v1298 = vpop.permute.xlu0 %1297
    %v1300 = vlaneseq
    %v1301 = vshrl.u32 %v1300, 7
    %v1302 = vsub.s32 2, %v1301
    %v1303 = vrot.slane %v1206, %v1302
    %v1304 = vlaneseq
    %v1305 = vshrl.u32 %v1304, 7
    %v1306 = vsub.s32 2, %v1305
    %v1307 = vrot.slane %v1210, %v1306
    %v1308 = vmul.f32 %v1298, %v1303
    %v1309 = vmul.f32 %v1298, %v1307
    %v1310 = vadd.f32 %v1294, %v1308
    %v1311 = vadd.f32 %v1295, %v1309
    %1312 = vset.pattern.permute.xlu0 3
    %1313 = vperm.xlu0 %1312, %v43
    %v1314 = vpop.permute.xlu0 %1313
    %v1316 = vlaneseq
    %v1317 = vshrl.u32 %v1316, 7
    %v1318 = vsub.s32 3, %v1317
    %v1319 = vrot.slane %v1185, %v1318
    %v1320 = vlaneseq
    %v1321 = vshrl.u32 %v1320, 7
    %v1322 = vsub.s32 3, %v1321
    %v1323 = vrot.slane %v1186, %v1322
    %v1324 = vmul.f32 %v1314, %v1319
    %v1325 = vmul.f32 %v1314, %v1323
    %v1326 = vadd.f32 %v1310, %v1324
    %v1327 = vadd.f32 %v1311, %v1325
    %1328 = vset.pattern.permute.xlu0 7
    %1329 = vperm.xlu0 %1328, %v43
    %v1330 = vpop.permute.xlu0 %1329
    %v1332 = vlaneseq
    %v1333 = vshrl.u32 %v1332, 7
    %v1334 = vsub.s32 3, %v1333
    %v1335 = vrot.slane %v1206, %v1334
    %v1336 = vlaneseq
    %v1337 = vshrl.u32 %v1336, 7
    %v1338 = vsub.s32 3, %v1337
    %v1339 = vrot.slane %v1210, %v1338
    %v1340 = vmul.f32 %v1330, %v1335
    %v1341 = vmul.f32 %v1330, %v1339
    %v1342 = vadd.f32 %v1326, %v1340
    %v1343 = vadd.f32 %v1327, %v1341
    %v1344 = vtanh.pop %v1342
    %v1345 = vtanh.pop %v1343
    %v1346 = vxor.u32 %v1342, 2147483648
    %v1347 = vxor.u32 %v1343, 2147483648
    %v1348 = vmul.f32 %v1346, 1.442695
    %v1349 = vpow.pop %v1348
    %v1350 = vmul.f32 %v1347, 1.442695
    %v1351 = vpow.pop %v1350
    %v1352 = vadd.f32 %v1349, 1.0
    %v1353 = vadd.f32 %v1351, 1.0
    %v1354 = vrcp.pop %v1352
    %v1355 = vmul.f32 1.0, %v1354
    %v1356 = vrcp.pop %v1353
    %v1357 = vmul.f32 1.0, %v1356
    %v1360 = vrot.slane %v1355, 4
    %v1361 = vrot.slane %v1357, 4
    %v1364 = vmul.f32 %v1344, %v1360
    %v1365 = vmul.f32 %v1345, %v1361
    %1366 = vset.pattern.permute.xlu0 9
    %1367 = vperm.xlu0 %1366, %v43
    %v1368 = vpop.permute.xlu0 %1367
    %v1370 = vlaneseq
    %v1371 = vshrl.u32 %v1370, 7
    %v1372 = vsub.s32 4, %v1371
    %v1373 = vrot.slane %v1364, %v1372
    %v1374 = vlaneseq
    %v1375 = vshrl.u32 %v1374, 7
    %v1376 = vsub.s32 4, %v1375
    %v1377 = vrot.slane %v1365, %v1376
    %v1378 = vmul.f32 %v1368, %v1373
    %v1379 = vmul.f32 %v1368, %v1377
    %1380 = vset.pattern.permute.xlu0 13
    %1381 = vperm.xlu0 %1380, %v43
    %v1382 = vpop.permute.xlu0 %1381
    %v1384 = vadd.f32 %v1378, %v1382
    %v1385 = vadd.f32 %v1379, %v1382
    %1386 = vset.pattern.permute.xlu0 10
    %1387 = vperm.xlu0 %1386, %v43
    %v1388 = vpop.permute.xlu0 %1387
    %v1390 = vlaneseq
    %v1391 = vshrl.u32 %v1390, 7
    %v1392 = vsub.s32 5, %v1391
    %v1393 = vrot.slane %v1364, %v1392
    %v1394 = vlaneseq
    %v1395 = vshrl.u32 %v1394, 7
    %v1396 = vsub.s32 5, %v1395
    %v1397 = vrot.slane %v1365, %v1396
    %v1398 = vmul.f32 %v1388, %v1393
    %v1399 = vmul.f32 %v1388, %v1397
    %v1400 = vadd.f32 %v1384, %v1398
    %v1401 = vadd.f32 %v1385, %v1399
    %1402 = vset.pattern.permute.xlu0 11
    %1403 = vperm.xlu0 %1402, %v43
    %v1404 = vpop.permute.xlu0 %1403
    %v1406 = vlaneseq
    %v1407 = vshrl.u32 %v1406, 7
    %v1408 = vsub.s32 6, %v1407
    %v1409 = vrot.slane %v1364, %v1408
    %v1410 = vlaneseq
    %v1411 = vshrl.u32 %v1410, 7
    %v1412 = vsub.s32 6, %v1411
    %v1413 = vrot.slane %v1365, %v1412
    %v1414 = vmul.f32 %v1404, %v1409
    %v1415 = vmul.f32 %v1404, %v1413
    %v1416 = vadd.f32 %v1400, %v1414
    %v1417 = vadd.f32 %v1401, %v1415
    %1418 = vset.pattern.permute.xlu0 12
    %1419 = vperm.xlu0 %1418, %v43
    %v1420 = vpop.permute.xlu0 %1419
    %v1422 = vlaneseq
    %v1423 = vshrl.u32 %v1422, 7
    %v1424 = vsub.s32 7, %v1423
    %v1425 = vrot.slane %v1364, %v1424
    %v1426 = vlaneseq
    %v1427 = vshrl.u32 %v1426, 7
    %v1428 = vsub.s32 7, %v1427
    %v1429 = vrot.slane %v1365, %v1428
    %v1430 = vmul.f32 %v1420, %v1425
    %v1431 = vmul.f32 %v1420, %v1429
    %v1432 = vadd.f32 %v1416, %v1430
    %v1433 = vadd.f32 %v1417, %v1431
    %v1434 = vadd.f32 %v1198, %v1432
    %v1435 = vadd.f32 %v1199, %v1433
    %1436 = vset.pattern.permute.xlu0 14
    %1437 = vperm.xlu0 %1436, %v38
    %v1438 = vpop.permute.xlu0 %1437
    %v1439 = vrot.slane %v1438, 4
    %v1441 = vadd.f32 %v1434, %v1439
    %v1442 = vadd.f32 %v1435, %v1439
    %v1445 = vcombine.high %v1441, %v1442
    %v1447 = vunpack.c.l.s4 1966171168
    %v1448 = vunpack.c.0.s8 %v1447
    %v1449 = vlaneseq
    %v1450 = vshrl.u32 %v1449, 7
    %v1451 = vsub.s32 %v1448, %v1450
    %v1452 = vrot.slane %v1445, %v1451
    %v1454 = vunpack.c.l.s4 1966171168
    %v1455 = vunpack.c.0.s8 %v1454
    %v1456 = vlaneseq
    %v1457 = vshrl.u32 %v1456, 7
    %v1458 = vsub.s32 %v1455, %v1457
    %v1459 = vrot.slane %v1452, %v1458
    %v1461 = vlaneseq
    %vm1462 = vcmp.ge.s32.totalorder %v1461, 0
    %vm1463 = vcmp.lt.s32.totalorder %v1461, 256
    %vm1464 = vmand %vm1462, %vm1463
    %1465 = vst.msk [vmem:[#allocation7] sm:$0x3] %vm1464, %v1459
    // Predicated region
    $region18: #{tpu_custom_call.1} parent=1 // pred_check
      _
    $region19: #{tpu_custom_call.1} parent=1 // pred_check_branch
      %1467 = sbr.rel (0) target = $region21
    $region20: #{tpu_custom_call.1} parent=1 // pred_region
      %s1469 = ssub.s32 32, 32
      %1470 = vsyncadd [#allocation4], %s1469
      %s1472 = sshll.u32 [#allocation7], 4
      %s1473 = int_to_ptr.vmem [resolvable:$true] %s1472
      %1475 = dma.vmem_to_hbm [thread:$0]  %s1473, 32, %s2, [#allocation4]
    $region21: #{tpu_custom_call.1} parent=1 // pred_fallthru
      _
    // Predicated region
    $region22: #{tpu_custom_call.1} parent=1 // pred_check
      _
    $region23: #{tpu_custom_call.1} parent=1 // pred_check_branch
      %1477 = sbr.rel (0) target = $region25
    $region24: #{tpu_custom_call.1} parent=1 // pred_region
      %1478 = dma.done [#allocation4], 32
    $region25: #{tpu_custom_call.1} parent=1 // pred_fallthru
      _
    %1479 = vsyncpa [#allocation3], 1
    %1480 = vsyncpa [#allocation6], 1
    %1481 = vsyncpa [#allocation4], 1

</llo_original>
